<compile_context>
chip_gen: v6e
topology: v6e:2x2x1
jax: 0.10.0
libtpu: 0.0.40
codegen_flags: <defaults>
</compile_context>

<pallas_src>
import functools

import numpy as np

import jax
import jax.numpy as jnp
from jax.experimental import pallas as pl
from jax.experimental.pallas import tpu as pltpu


_LN_EPS = 1e-12
_LANE = 128


def _cdiv(a, b):
    return (a + b - 1) // b


def _round_up(a, b):
    return _cdiv(a, b) * b


def _layer_norm_rows(x, gamma, beta, h_real, eps=_LN_EPS):
    """Single-pass BertLayerNorm over the last axis.

    `x` may be zero-padded along the feature axis; statistics use the REAL
    feature count `h_real`, which makes the zero padding numerically exact.
    """
    inv_h = 1.0 / float(h_real)
    s1 = jnp.sum(x, axis=-1, keepdims=True)
    s2 = jnp.sum(x * x, axis=-1, keepdims=True)
    mu = s1 * inv_h
    var = jnp.maximum(s2 * inv_h - mu * mu, 0.0)      # clamp guards cancellation
    xhat = (x - mu) * jax.lax.rsqrt(var + eps)        # rsqrt -> EUP slot
    return gamma * xhat + beta


def _mpp_kernel(x_ref, w_ref, vp_ref,
                w1m_ref, w2m_ref, w1n_ref, w2n_ref, b2n_ref,
                o_ref, *, h_real, matmul_dtype):
    md = matmul_dtype
    x = x_ref[...].astype(jnp.float32)                # (TM, Hp) residual input, f32
    w = w_ref[...]                                    # (TM, Pp) already matmul dtype

    vp = vp_ref[...]                                  # (8, Hp) packed f32 vector params
    b1m, gm, bem, b2m = vp[0:1], vp[1:2], vp[2:3], vp[3:4]
    b1n, gn, ben = vp[4:5], vp[5:6], vp[6:7]

    # ---- map_weight: Linear(P->H) -> ReLU -> LayerNorm(H) -> Linear(H->H) ----
    h = jnp.dot(w, w1m_ref[...], preferred_element_type=jnp.float32)
    h = jnp.maximum(h + b1m, 0.0)
    h = _layer_norm_rows(h, gm, bem, h_real)
    wmap = jnp.dot(h.astype(md), w2m_ref[...],
                   preferred_element_type=jnp.float32) + b2m

    # ---- residual-style add (f32) ----
    z = x + wmap                                      # (TM, Hp)

    # ---- net: Linear(H->H) -> ReLU -> LayerNorm(H) -> Linear(H->L) ----
    h2 = jnp.dot(z.astype(md), w1n_ref[...], preferred_element_type=jnp.float32)
    h2 = jnp.maximum(h2 + b1n, 0.0)
    h2 = _layer_norm_rows(h2, gn, ben, h_real)
    out = jnp.dot(h2.astype(md), w2n_ref[...], preferred_element_type=jnp.float32)
    out = out + b2n_ref[...]

    o_ref[...] = out.astype(o_ref.dtype)              # lane-dense (TM, Lp) store


@functools.lru_cache(maxsize=None)
def _single_buffer_supported():
    """Capability check for BlockSpec(pipeline_mode=pl.Buffered(1))."""
    if not hasattr(pl, "Buffered"):
        return False
    try:
        pl.BlockSpec((8, 128), lambda i: (0, 0), pipeline_mode=pl.Buffered(1))
    except TypeError:
        return False
    return True


def _physical_vmem_bytes():
    try:
        info = pltpu.get_tpu_info()
        v = getattr(info, "vmem_capacity_bytes", None)
        if v:
            return int(v)
    except Exception:
        pass
    return 64 << 20    # conservative fallback: v7x per-TensorCore VMEM


def _choose_tile(n, tile_m, *, num_cores=2, steps_per_core=4):
    """Row tile: enough grid steps for DMA pipelining on every TC, MXU-aligned rows."""
    total_steps = num_cores * steps_per_core
    row_align = 256 if n >= 256 * total_steps else 128   # 256 for big N (v6e/v7x MXU)
    target = _round_up(max(1, _cdiv(n, total_steps)), row_align)
    tile = min(_round_up(max(int(tile_m), row_align), row_align), target)
    return max(row_align, tile)


def _vmem_budget_bytes(tile, hp, pp, lp, md_bytes, out_bytes, param_buffers):
    act = 2 * tile * (hp * 4 + pp * md_bytes + lp * out_bytes)        # pipelined tiles
    par = param_buffers * ((pp * hp + 2 * hp * hp + hp * lp) * md_bytes
                           + (8 * hp + 8 * lp) * 4)                   # grid-invariant
    live = tile * (6 * hp + 2 * lp) * 4                               # f32 intermediates
    budget = int((act + par + live) * 1.5) + (4 << 20)
    cap = max(_physical_vmem_bytes() - (8 << 20), 16 << 20)           # leave headroom
    return int(min(max(budget, 32 << 20), cap))


def weighted_mpp_prediction(input_, weight, params, *, tile_m=512,
                            matmul_dtype=jnp.bfloat16, out_dtype=None):
    """input_: (N, H); weight: (N, P, 1); returns (N, label_dim)."""
    N, H = input_.shape
    P = weight.shape[1]
    L = params["w2n"].shape[1]
    out_dtype = input_.dtype if out_dtype is None else out_dtype
    md = matmul_dtype
    md_bytes = np.dtype(md).itemsize
    out_bytes = np.dtype(out_dtype).itemsize

    Hp = _round_up(H, _LANE)
    Pp = _round_up(P, _LANE)
    Lp = _round_up(L, _LANE)

    # --- glue: weight.squeeze(-1); zero-pad contraction / label dims ---
    weight2d = jnp.squeeze(weight, axis=-1)                            # (N, P)

    w1m = jnp.pad(params["w1m"], ((0, Pp - P), (0, Hp - H))).astype(md)
    w2m = jnp.pad(params["w2m"], ((0, Hp - H), (0, Hp - H))).astype(md)
    w1n = jnp.pad(params["w1n"], ((0, Hp - H), (0, Hp - H))).astype(md)
    w2n = jnp.pad(params["w2n"], ((0, Hp - H), (0, Lp - L))).astype(md)
    b2n = jnp.pad(params["b2n"], ((0, 0), (0, Lp - L))).astype(jnp.float32)

    # pack the seven (1,H) vector params (f32 path) into one (8, Hp) block
    vparams = jnp.concatenate(
        [params[k] for k in ("b1m", "gm", "bem", "b2m", "b1n", "gn", "ben")], axis=0)
    vparams = jnp.pad(vparams.astype(jnp.float32), ((0, 1), (0, Hp - H)))

    # --- token tile, row padding ---
    tile = _choose_tile(N, tile_m)
    Np = _round_up(N, tile)
    x_p = jnp.pad(input_.astype(jnp.float32), ((0, Np - N), (0, Hp - H)))
    w_p = jnp.pad(weight2d, ((0, Np - N), (0, Pp - P))).astype(md)
    grid = (Np // tile,)

    single_buf = _single_buffer_supported()
    pkw = {"pipeline_mode": pl.Buffered(1)} if single_buf else {}
    param_buffers = 1 if single_buf else 2

    def act_spec(cols):
        return pl.BlockSpec((tile, cols), lambda i: (i, 0))

    def const_spec(shape):
        return pl.BlockSpec(shape, lambda i: (0, 0), **pkw)

    args = (x_p, w_p, vparams, w1m, w2m, w1n, w2n, b2n)
    flops = 2 * Np * (Pp * Hp + 2 * Hp * Hp + Hp * Lp)
    bytes_accessed = int(sum(int(a.size) * a.dtype.itemsize for a in args)
                         + Np * Lp * out_bytes)

    call = pl.pallas_call(
        functools.partial(_mpp_kernel, h_real=H, matmul_dtype=md),
        out_shape=jax.ShapeDtypeStruct((Np, Lp), out_dtype),
        grid_spec=pltpu.PrefetchScalarGridSpec(
            num_scalar_prefetch=0,
            grid=grid,
            in_specs=[act_spec(Hp), act_spec(Pp),
                      const_spec((8, Hp)),
                      const_spec((Pp, Hp)), const_spec((Hp, Hp)),
                      const_spec((Hp, Hp)), const_spec((Hp, Lp)),
                      const_spec((1, Lp))],
            out_specs=act_spec(Lp),
        ),
        compiler_params=pltpu.CompilerParams(
            dimension_semantics=("parallel",),
            vmem_limit_bytes=_vmem_budget_bytes(tile, Hp, Pp, Lp, md_bytes,
                                                out_bytes, param_buffers),
        ),
        cost_estimate=pl.CostEstimate(flops=flops,
                                      transcendentals=2 * Np,
                                      bytes_accessed=bytes_accessed),
    )
    out = call(*args)
    return out[:N, :L]


def init_params(key, hidden_size, label_dim, num_patches):
    """Deterministic synthetic parameters. Linear weights stored as (in, out)."""
    ks = jax.random.split(key, 8)
    s = 0.02
    return {
        # map_weight: Linear(P,H), LN(H), Linear(H,H)
        "w1m": jax.random.normal(ks[0], (num_patches, hidden_size), jnp.float32) * s,
        "b1m": jnp.zeros((1, hidden_size), jnp.float32),
        "gm":  jnp.ones((1, hidden_size), jnp.float32),
        "bem": jnp.zeros((1, hidden_size), jnp.float32),
        "w2m": jax.random.normal(ks[1], (hidden_size, hidden_size), jnp.float32) * s,
        "b2m": jax.random.normal(ks[2], (1, hidden_size), jnp.float32) * s,
        # net: Linear(H,H), LN(H), Linear(H,label_dim)
        "w1n": jax.random.normal(ks[3], (hidden_size, hidden_size), jnp.float32) * s,
        "b1n": jax.random.normal(ks[4], (1, hidden_size), jnp.float32) * s,
        "gn":  jnp.ones((1, hidden_size), jnp.float32),
        "ben": jnp.zeros((1, hidden_size), jnp.float32),
        "w2n": jax.random.normal(ks[5], (hidden_size, label_dim), jnp.float32) * s,
        "b2n": jax.random.normal(ks[6], (1, label_dim), jnp.float32) * s,
    }


def _layer_norm_ref(x, gamma, beta, eps=_LN_EPS):
    mu = jnp.mean(x, axis=-1, keepdims=True)
    var = jnp.mean((x - mu) ** 2, axis=-1, keepdims=True)
    return gamma * (x - mu) * jax.lax.rsqrt(var + eps) + beta


def reference_forward(input_, weight, params):
    """Pure-JAX f32 reference mirroring the PyTorch forward."""
    w = jnp.squeeze(weight, -1)
    h = jnp.maximum(w @ params["w1m"] + params["b1m"], 0.0)
    h = _layer_norm_ref(h, params["gm"], params["bem"])
    wmap = h @ params["w2m"] + params["b2m"]
    z = input_ + wmap
    h2 = jnp.maximum(z @ params["w1n"] + params["b1n"], 0.0)
    h2 = _layer_norm_ref(h2, params["gn"], params["ben"])
    return h2 @ params["w2n"] + params["b2n"]


if __name__ == "__main__":
    hidden_size = 32
    label_dim = 12
    num_patches = 16

    key = jax.random.PRNGKey(0)
    k_in, k_w, k_p, k_in2, k_w2 = jax.random.split(key, 5)
    params = init_params(k_p, hidden_size, label_dim, num_patches)

    # Case 1: tiny N, default bf16 MXU operands.
    N1 = 16
    x1 = jax.random.normal(k_in, (N1, hidden_size), jnp.float32)
    w1 = jax.random.normal(k_w, (N1, num_patches, 1), jnp.float32)
    out1 = jax.block_until_ready(weighted_mpp_prediction(x1, w1, params))
    ref1 = reference_forward(x1, w1, params)
    assert out1.shape == (N1, label_dim)
    assert jnp.allclose(out1, ref1, atol=2e-2, rtol=2e-2), "mismatch (case 1, bf16)"

    # Case 2: N not divisible by the tile (row padding) + smaller requested tile.
    N2 = 200
    x2 = jax.random.normal(k_in2, (N2, hidden_size), jnp.float32)
    w2 = jax.random.normal(k_w2, (N2, num_patches, 1), jnp.float32)
    out2 = jax.block_until_ready(weighted_mpp_prediction(x2, w2, params, tile_m=256))
    ref2 = reference_forward(x2, w2, params)
    assert out2.shape == (N2, label_dim)
    assert jnp.allclose(out2, ref2, atol=2e-2, rtol=2e-2), "mismatch (case 2, bf16)"

    # Case 3: f32 MXU operands — validates that the P/H/L zero padding and the
    # single-pass LayerNorm are numerically exact vs the two-pass f32 reference.
    out3 = jax.block_until_ready(
        weighted_mpp_prediction(x2, w2, params, matmul_dtype=jnp.float32))
    assert jnp.allclose(out3, ref2, atol=1e-4, rtol=1e-4), "mismatch (case 3, f32)"

    print("KERNEL_OK")
</pallas_src>

<mosaic_0001>
module attributes {stable_mosaic.version = 11 : i64} {
  func.func @_mpp_kernel(%arg0: i32, %arg1: memref<128x128xf32, #tpu.memory_space<vmem>>, %arg2: memref<128x128xbf16, #tpu.memory_space<vmem>>, %arg3: memref<8x128xf32, #tpu.memory_space<vmem>>, %arg4: memref<128x128xbf16, #tpu.memory_space<vmem>>, %arg5: memref<128x128xbf16, #tpu.memory_space<vmem>>, %arg6: memref<128x128xbf16, #tpu.memory_space<vmem>>, %arg7: memref<128x128xbf16, #tpu.memory_space<vmem>>, %arg8: memref<1x128xf32, #tpu.memory_space<vmem>>, %arg9: memref<128x128xf32, #tpu.memory_space<vmem>>) attributes {dimension_semantics = [#tpu.dimension_semantics<parallel>], iteration_bounds = array<i64: 1>, scalar_prefetch = 0 : i64, scratch_operands = 0 : i64, tpu.core_type = #tpu.core_type<tc>, window_params = [{transform_indices = @transform_0, window_bounds = array<i64: 128, 128>}, {transform_indices = @transform_1, window_bounds = array<i64: 128, 128>}, {pipeline_mode = #tpu.pipeline_mode<synchronous>, transform_indices = @transform_2, window_bounds = array<i64: 8, 128>}, {pipeline_mode = #tpu.pipeline_mode<synchronous>, transform_indices = @transform_3, window_bounds = array<i64: 128, 128>}, {pipeline_mode = #tpu.pipeline_mode<synchronous>, transform_indices = @transform_4, window_bounds = array<i64: 128, 128>}, {pipeline_mode = #tpu.pipeline_mode<synchronous>, transform_indices = @transform_5, window_bounds = array<i64: 128, 128>}, {pipeline_mode = #tpu.pipeline_mode<synchronous>, transform_indices = @transform_6, window_bounds = array<i64: 128, 128>}, {pipeline_mode = #tpu.pipeline_mode<synchronous>, transform_indices = @transform_7, window_bounds = array<i64: 1, 128>}, {transform_indices = @transform_8, window_bounds = array<i64: 128, 128>}]} {
    %c0 = arith.constant 0 : index
    %c0_0 = arith.constant 0 : index
    %0 = vector.load %arg1[%c0, %c0_0] : memref<128x128xf32, #tpu.memory_space<vmem>>, vector<128x128xf32>
    %c0_1 = arith.constant 0 : index
    %c0_2 = arith.constant 0 : index
    %1 = vector.load %arg2[%c0_1, %c0_2] : memref<128x128xbf16, #tpu.memory_space<vmem>>, vector<128x128xbf16>
    %c0_3 = arith.constant 0 : index
    %c0_4 = arith.constant 0 : index
    %2 = vector.load %arg3[%c0_3, %c0_4] : memref<8x128xf32, #tpu.memory_space<vmem>>, vector<8x128xf32>
    %3 = vector.extract_strided_slice %2 {offsets = [0, 0], sizes = [1, 128], strides = [1, 1]} : vector<8x128xf32> to vector<1x128xf32>
    %4 = vector.extract_strided_slice %2 {offsets = [1, 0], sizes = [1, 128], strides = [1, 1]} : vector<8x128xf32> to vector<1x128xf32>
    %5 = vector.extract_strided_slice %2 {offsets = [2, 0], sizes = [1, 128], strides = [1, 1]} : vector<8x128xf32> to vector<1x128xf32>
    %6 = vector.extract_strided_slice %2 {offsets = [3, 0], sizes = [1, 128], strides = [1, 1]} : vector<8x128xf32> to vector<1x128xf32>
    %7 = vector.extract_strided_slice %2 {offsets = [4, 0], sizes = [1, 128], strides = [1, 1]} : vector<8x128xf32> to vector<1x128xf32>
    %8 = vector.extract_strided_slice %2 {offsets = [5, 0], sizes = [1, 128], strides = [1, 1]} : vector<8x128xf32> to vector<1x128xf32>
    %9 = vector.extract_strided_slice %2 {offsets = [6, 0], sizes = [1, 128], strides = [1, 1]} : vector<8x128xf32> to vector<1x128xf32>
    %c0_5 = arith.constant 0 : index
    %c0_6 = arith.constant 0 : index
    %10 = vector.load %arg4[%c0_5, %c0_6] : memref<128x128xbf16, #tpu.memory_space<vmem>>, vector<128x128xbf16>
    %cst = arith.constant dense<0.000000e+00> : vector<128x128xf32>
    %11 = tpu.matmul %1, %10, %cst {dimension_numbers = #tpu.dot_dimension_numbers<[1], [0], [0], [1], [0, 0, 1, 1], [], []>} : vector<128x128xbf16>, vector<128x128xbf16>, vector<128x128xf32> -> vector<128x128xf32>
    %12 = vector.broadcast %3 : vector<1x128xf32> to vector<128x128xf32>
    %13 = arith.addf %11, %12 : vector<128x128xf32>
    %cst_7 = arith.constant 0.000000e+00 : f32
    %14 = vector.broadcast %cst_7 : f32 to vector<128x128xf32>
    %15 = arith.maximumf %13, %14 : vector<128x128xf32>
    %cst_8 = arith.constant dense<0.000000e+00> : vector<128xf32>
    %16 = vector.multi_reduction <add>, %15, %cst_8 [1] : vector<128x128xf32> to vector<128xf32>
    %17 = vector.shape_cast %16 : vector<128xf32> to vector<128x1xf32>
    %18 = arith.mulf %15, %15 : vector<128x128xf32>
    %cst_9 = arith.constant dense<0.000000e+00> : vector<128xf32>
    %19 = vector.multi_reduction <add>, %18, %cst_9 [1] : vector<128x128xf32> to vector<128xf32>
    %20 = vector.shape_cast %19 : vector<128xf32> to vector<128x1xf32>
    %cst_10 = arith.constant 3.125000e-02 : f32
    %21 = vector.broadcast %cst_10 : f32 to vector<128x1xf32>
    %22 = arith.mulf %17, %21 : vector<128x1xf32>
    %cst_11 = arith.constant 3.125000e-02 : f32
    %23 = vector.broadcast %cst_11 : f32 to vector<128x1xf32>
    %24 = arith.mulf %20, %23 : vector<128x1xf32>
    %25 = arith.mulf %22, %22 : vector<128x1xf32>
    %26 = arith.subf %24, %25 : vector<128x1xf32>
    %cst_12 = arith.constant 0.000000e+00 : f32
    %27 = vector.broadcast %cst_12 : f32 to vector<128x1xf32>
    %28 = arith.maximumf %26, %27 : vector<128x1xf32>
    %29 = vector.broadcast %22 : vector<128x1xf32> to vector<128x128xf32>
    %30 = arith.subf %15, %29 : vector<128x128xf32>
    %cst_13 = arith.constant 9.99999996E-13 : f32
    %31 = vector.broadcast %cst_13 : f32 to vector<128x1xf32>
    %32 = arith.addf %28, %31 : vector<128x1xf32>
    %33 = math.rsqrt %32 : vector<128x1xf32>
    %34 = vector.broadcast %33 : vector<128x1xf32> to vector<128x128xf32>
    %35 = arith.mulf %30, %34 : vector<128x128xf32>
    %36 = vector.broadcast %4 : vector<1x128xf32> to vector<128x128xf32>
    %37 = arith.mulf %36, %35 : vector<128x128xf32>
    %38 = vector.broadcast %5 : vector<1x128xf32> to vector<128x128xf32>
    %39 = arith.addf %37, %38 : vector<128x128xf32>
    %40 = arith.truncf %39 : vector<128x128xf32> to vector<128x128xbf16>
    %c0_14 = arith.constant 0 : index
    %c0_15 = arith.constant 0 : index
    %41 = vector.load %arg5[%c0_14, %c0_15] : memref<128x128xbf16, #tpu.memory_space<vmem>>, vector<128x128xbf16>
    %cst_16 = arith.constant dense<0.000000e+00> : vector<128x128xf32>
    %42 = tpu.matmul %40, %41, %cst_16 {dimension_numbers = #tpu.dot_dimension_numbers<[1], [0], [0], [1], [0, 0, 1, 1], [], []>} : vector<128x128xbf16>, vector<128x128xbf16>, vector<128x128xf32> -> vector<128x128xf32>
    %43 = vector.broadcast %6 : vector<1x128xf32> to vector<128x128xf32>
    %44 = arith.addf %42, %43 : vector<128x128xf32>
    %45 = arith.addf %0, %44 : vector<128x128xf32>
    %46 = arith.truncf %45 : vector<128x128xf32> to vector<128x128xbf16>
    %c0_17 = arith.constant 0 : index
    %c0_18 = arith.constant 0 : index
    %47 = vector.load %arg6[%c0_17, %c0_18] : memref<128x128xbf16, #tpu.memory_space<vmem>>, vector<128x128xbf16>
    %cst_19 = arith.constant dense<0.000000e+00> : vector<128x128xf32>
    %48 = tpu.matmul %46, %47, %cst_19 {dimension_numbers = #tpu.dot_dimension_numbers<[1], [0], [0], [1], [0, 0, 1, 1], [], []>} : vector<128x128xbf16>, vector<128x128xbf16>, vector<128x128xf32> -> vector<128x128xf32>
    %49 = vector.broadcast %7 : vector<1x128xf32> to vector<128x128xf32>
    %50 = arith.addf %48, %49 : vector<128x128xf32>
    %cst_20 = arith.constant 0.000000e+00 : f32
    %51 = vector.broadcast %cst_20 : f32 to vector<128x128xf32>
    %52 = arith.maximumf %50, %51 : vector<128x128xf32>
    %cst_21 = arith.constant dense<0.000000e+00> : vector<128xf32>
    %53 = vector.multi_reduction <add>, %52, %cst_21 [1] : vector<128x128xf32> to vector<128xf32>
    %54 = vector.shape_cast %53 : vector<128xf32> to vector<128x1xf32>
    %55 = arith.mulf %52, %52 : vector<128x128xf32>
    %cst_22 = arith.constant dense<0.000000e+00> : vector<128xf32>
    %56 = vector.multi_reduction <add>, %55, %cst_22 [1] : vector<128x128xf32> to vector<128xf32>
    %57 = vector.shape_cast %56 : vector<128xf32> to vector<128x1xf32>
    %cst_23 = arith.constant 3.125000e-02 : f32
    %58 = vector.broadcast %cst_23 : f32 to vector<128x1xf32>
    %59 = arith.mulf %54, %58 : vector<128x1xf32>
    %cst_24 = arith.constant 3.125000e-02 : f32
    %60 = vector.broadcast %cst_24 : f32 to vector<128x1xf32>
    %61 = arith.mulf %57, %60 : vector<128x1xf32>
    %62 = arith.mulf %59, %59 : vector<128x1xf32>
    %63 = arith.subf %61, %62 : vector<128x1xf32>
    %cst_25 = arith.constant 0.000000e+00 : f32
    %64 = vector.broadcast %cst_25 : f32 to vector<128x1xf32>
    %65 = arith.maximumf %63, %64 : vector<128x1xf32>
    %66 = vector.broadcast %59 : vector<128x1xf32> to vector<128x128xf32>
    %67 = arith.subf %52, %66 : vector<128x128xf32>
    %cst_26 = arith.constant 9.99999996E-13 : f32
    %68 = vector.broadcast %cst_26 : f32 to vector<128x1xf32>
    %69 = arith.addf %65, %68 : vector<128x1xf32>
    %70 = math.rsqrt %69 : vector<128x1xf32>
    %71 = vector.broadcast %70 : vector<128x1xf32> to vector<128x128xf32>
    %72 = arith.mulf %67, %71 : vector<128x128xf32>
    %73 = vector.broadcast %8 : vector<1x128xf32> to vector<128x128xf32>
    %74 = arith.mulf %73, %72 : vector<128x128xf32>
    %75 = vector.broadcast %9 : vector<1x128xf32> to vector<128x128xf32>
    %76 = arith.addf %74, %75 : vector<128x128xf32>
    %77 = arith.truncf %76 : vector<128x128xf32> to vector<128x128xbf16>
    %c0_27 = arith.constant 0 : index
    %c0_28 = arith.constant 0 : index
    %78 = vector.load %arg7[%c0_27, %c0_28] : memref<128x128xbf16, #tpu.memory_space<vmem>>, vector<128x128xbf16>
    %cst_29 = arith.constant dense<0.000000e+00> : vector<128x128xf32>
    %79 = tpu.matmul %77, %78, %cst_29 {dimension_numbers = #tpu.dot_dimension_numbers<[1], [0], [0], [1], [0, 0, 1, 1], [], []>} : vector<128x128xbf16>, vector<128x128xbf16>, vector<128x128xf32> -> vector<128x128xf32>
    %c0_30 = arith.constant 0 : index
    %c0_31 = arith.constant 0 : index
    %80 = vector.load %arg8[%c0_30, %c0_31] : memref<1x128xf32, #tpu.memory_space<vmem>>, vector<1x128xf32>
    %81 = vector.broadcast %80 : vector<1x128xf32> to vector<128x128xf32>
    %82 = arith.addf %79, %81 : vector<128x128xf32>
    %c0_32 = arith.constant 0 : index
    %c0_33 = arith.constant 0 : index
    %83 = vector.load %arg9[%c0_32, %c0_33] : memref<128x128xf32, #tpu.memory_space<vmem>>, vector<128x128xf32>
    tpu.vector_store %arg9[%c0_32, %c0_33], %82 {strides = array<i32>} : memref<128x128xf32, #tpu.memory_space<vmem>>, vector<128x128xf32>,
    return
  }
  func.func @transform_0(%arg0: i32) -> (i32, i32) {
    %c0_i32 = arith.constant 0 : i32
    %c0_i32_0 = arith.constant 0 : i32
    return %arg0, %c0_i32 : i32, i32
  }
  func.func @transform_1(%arg0: i32) -> (i32, i32) {
    %c0_i32 = arith.constant 0 : i32
    %c0_i32_0 = arith.constant 0 : i32
    return %arg0, %c0_i32 : i32, i32
  }
  func.func @transform_2(%arg0: i32) -> (i32, i32) {
    %c0_i32 = arith.constant 0 : i32
    %c0_i32_0 = arith.constant 0 : i32
    %c0_i32_1 = arith.constant 0 : i32
    return %c0_i32, %c0_i32_0 : i32, i32
  }
  func.func @transform_3(%arg0: i32) -> (i32, i32) {
    %c0_i32 = arith.constant 0 : i32
    %c0_i32_0 = arith.constant 0 : i32
    %c0_i32_1 = arith.constant 0 : i32
    return %c0_i32, %c0_i32_0 : i32, i32
  }
  func.func @transform_4(%arg0: i32) -> (i32, i32) {
    %c0_i32 = arith.constant 0 : i32
    %c0_i32_0 = arith.constant 0 : i32
    %c0_i32_1 = arith.constant 0 : i32
    return %c0_i32, %c0_i32_0 : i32, i32
  }
  func.func @transform_5(%arg0: i32) -> (i32, i32) {
    %c0_i32 = arith.constant 0 : i32
    %c0_i32_0 = arith.constant 0 : i32
    %c0_i32_1 = arith.constant 0 : i32
    return %c0_i32, %c0_i32_0 : i32, i32
  }
  func.func @transform_6(%arg0: i32) -> (i32, i32) {
    %c0_i32 = arith.constant 0 : i32
    %c0_i32_0 = arith.constant 0 : i32
    %c0_i32_1 = arith.constant 0 : i32
    return %c0_i32, %c0_i32_0 : i32, i32
  }
  func.func @transform_7(%arg0: i32) -> (i32, i32) {
    %c0_i32 = arith.constant 0 : i32
    %c0_i32_0 = arith.constant 0 : i32
    %c0_i32_1 = arith.constant 0 : i32
    return %c0_i32, %c0_i32_0 : i32, i32
  }
  func.func @transform_8(%arg0: i32) -> (i32, i32) {
    %c0_i32 = arith.constant 0 : i32
    %c0_i32_0 = arith.constant 0 : i32
    return %arg0, %c0_i32 : i32, i32
  }
}

</mosaic_0001>

<llo_original>
// kernel: tpu_custom_call.1
$region0: #{tpu_custom_call.1}
  #allocation0 [shape = 'u32[]', space=smem, size = 0x4, offset = 0x4, fixed_abs, tag = 'smem constant byte address 0x4 - core index']
  #allocation1 [shape = 'u32[144,128]{1,0:T(1,128)}', space=vmem, size = 0x12000, scoped, tag = 'internal scratch']
  %s0 = inlined_call_operand.hbm [shape: f32[128,128], index: 0, kind: input, shape index: {}]
  %s1 = inlined_call_operand.hbm [shape: bf16[128,128], index: 1, kind: input, shape index: {}]
  %s2 = inlined_call_operand.hbm [shape: f32[8,128], index: 2, kind: input, shape index: {}]
  %s3 = inlined_call_operand.hbm [shape: bf16[128,128], index: 3, kind: input, shape index: {}]
  %s4 = inlined_call_operand.hbm [shape: bf16[128,128], index: 4, kind: input, shape index: {}]
  %s5 = inlined_call_operand.hbm [shape: bf16[128,128], index: 5, kind: input, shape index: {}]
  %s6 = inlined_call_operand.hbm [shape: bf16[128,128], index: 6, kind: input, shape index: {}]
  %s7 = inlined_call_operand.vmem [shape: f32[1,128], index: 7, kind: input, shape index: {}]
  %s8 = inlined_call_operand.hbm [shape: f32[128,128], index: 8, kind: output, shape index: {}]
  %s9 = sld [smem:[#allocation0]]
  $region70: #{tpu_custom_call.1} parent=0
    _
  %s11 = ssub.s32 1, %s9
  %s12 = scalar_select 0, %s11, %s9
  $region1: #{tpu_custom_call.1} parent=0
    #allocation2 [shape = 'u8[65536]{0}', space=vmem, size = 0x10000, scoped, tag = 'input window, operand 0, single buffered']
    #allocation3 [shape = 's32[1]{0}', space=sflag, size = 0x4, scoped, tag = 'scoped memory for tpu_custom_call.1']
    #allocation4 [shape = 's32[1]{0}', space=sflag, size = 0x4, scoped, tag = 'scoped memory for tpu_custom_call.1']
    #allocation5 [shape = 'u8[32768]{0}', space=vmem, size = 0x8000, scoped, tag = 'input window, operand 1, single buffered']
    #allocation6 [shape = 's32[1]{0}', space=sflag, size = 0x4, scoped, tag = 'scoped memory for tpu_custom_call.1']
    #allocation7 [shape = 'u8[4096]{0}', space=vmem, size = 0x1000, scoped, tag = 'input window, operand 2, single buffered']
    #allocation8 [shape = 'u8[32768]{0}', space=vmem, size = 0x8000, scoped, tag = 'input window, operand 3, single buffered']
    #allocation9 [shape = 's32[1]{0}', space=sflag, size = 0x4, scoped, tag = 'scoped memory for tpu_custom_call.1']
    #allocation10 [shape = 'u8[32768]{0}', space=vmem, size = 0x8000, scoped, tag = 'input window, operand 4, single buffered']
    #allocation11 [shape = 'u8[32768]{0}', space=vmem, size = 0x8000, scoped, tag = 'input window, operand 5, single buffered']
    #allocation12 [shape = 's32[1]{0}', space=sflag, size = 0x4, scoped, tag = 'scoped memory for tpu_custom_call.1']
    #allocation13 [shape = 'u8[32768]{0}', space=vmem, size = 0x8000, scoped, tag = 'input window, operand 6, single buffered']
    #allocation14 [shape = 'u8[65536]{0}', space=vmem, size = 0x10000, scoped, tag = 'output window, operand 0, single buffered']
    %13 = vsyncpa [#allocation3], 0
    %14 = vsyncpa [#allocation6], 0
    %15 = vsyncpa [#allocation9], 0
    %16 = vsyncpa [#allocation12], 0
    %17 = vsyncpa [#allocation4], 0
    // Predicated region
    $region2: #{tpu_custom_call.1} parent=1 // pred_check
      _
    $region3: #{tpu_custom_call.1} parent=1 // pred_check_branch
      %19 = sbr.rel (0) target = $region5
    $region4: #{tpu_custom_call.1} parent=1 // pred_region
      %s21 = ssub.s32 2048, 2048
      %22 = vsyncadd [#allocation3], %s21
      %s23 = sshll.u32 [#allocation2], 4
      %s24 = int_to_ptr.vmem [resolvable:$true] %s23
      %29 = dma.hbm_to_vmem [thread:$0]  %s0, 2048, %s24, [#allocation3], 128, 128, 8
    $region5: #{tpu_custom_call.1} parent=1 // pred_fallthru
      _
    // Predicated region
    $region6: #{tpu_custom_call.1} parent=1 // pred_check
      _
    $region7: #{tpu_custom_call.1} parent=1 // pred_check_branch
      %31 = sbr.rel (0) target = $region9
    $region8: #{tpu_custom_call.1} parent=1 // pred_region
      %s33 = ssub.s32 1024, 1024
      %34 = vsyncadd [#allocation6], %s33
      %s35 = sshll.u32 [#allocation5], 4
      %s36 = int_to_ptr.vmem [resolvable:$true] %s35
      %41 = dma.hbm_to_vmem [thread:$0]  %s1, 1024, %s36, [#allocation6], 64, 64, 4
    $region9: #{tpu_custom_call.1} parent=1 // pred_fallthru
      _
    // Predicated region
    $region10: #{tpu_custom_call.1} parent=1 // pred_check
      _
    $region11: #{tpu_custom_call.1} parent=1 // pred_check_branch
      %43 = sbr.rel (0) target = $region13
    $region12: #{tpu_custom_call.1} parent=1 // pred_region
      %s45 = ssub.s32 128, 128
      %46 = vsyncadd [#allocation6], %s45
      %s48 = sshll.u32 [#allocation7], 4
      %s49 = int_to_ptr.vmem [resolvable:$true] %s48
      %51 = dma.hbm_to_vmem [thread:$0]  %s2, 128, %s49, [#allocation6]
    $region13: #{tpu_custom_call.1} parent=1 // pred_fallthru
      _
    // Predicated region
    $region14: #{tpu_custom_call.1} parent=1 // pred_check
      _
    $region15: #{tpu_custom_call.1} parent=1 // pred_check_branch
      %53 = sbr.rel (0) target = $region17
    $region16: #{tpu_custom_call.1} parent=1 // pred_region
      %s55 = ssub.s32 1024, 1024
      %56 = vsyncadd [#allocation9], %s55
      %s57 = sshll.u32 [#allocation8], 4
      %s58 = int_to_ptr.vmem [resolvable:$true] %s57
      %63 = dma.hbm_to_vmem [thread:$0]  %s3, 1024, %s58, [#allocation9], 64, 64, 4
    $region17: #{tpu_custom_call.1} parent=1 // pred_fallthru
      _
    // Predicated region
    $region18: #{tpu_custom_call.1} parent=1 // pred_check
      _
    $region19: #{tpu_custom_call.1} parent=1 // pred_check_branch
      %65 = sbr.rel (0) target = $region21
    $region20: #{tpu_custom_call.1} parent=1 // pred_region
      %s67 = ssub.s32 1024, 1024
      %68 = vsyncadd [#allocation9], %s67
      %s69 = sshll.u32 [#allocation10], 4
      %s70 = int_to_ptr.vmem [resolvable:$true] %s69
      %75 = dma.hbm_to_vmem [thread:$0]  %s4, 1024, %s70, [#allocation9], 64, 64, 4
    $region21: #{tpu_custom_call.1} parent=1 // pred_fallthru
      _
    // Predicated region
    $region22: #{tpu_custom_call.1} parent=1 // pred_check
      _
    $region23: #{tpu_custom_call.1} parent=1 // pred_check_branch
      %77 = sbr.rel (0) target = $region25
    $region24: #{tpu_custom_call.1} parent=1 // pred_region
      %s79 = ssub.s32 1024, 1024
      %80 = vsyncadd [#allocation12], %s79
      %s81 = sshll.u32 [#allocation11], 4
      %s82 = int_to_ptr.vmem [resolvable:$true] %s81
      %87 = dma.hbm_to_vmem [thread:$0]  %s5, 1024, %s82, [#allocation12], 64, 64, 4
    $region25: #{tpu_custom_call.1} parent=1 // pred_fallthru
      _
    // Predicated region
    $region26: #{tpu_custom_call.1} parent=1 // pred_check
      _
    $region27: #{tpu_custom_call.1} parent=1 // pred_check_branch
      %89 = sbr.rel (0) target = $region29
    $region28: #{tpu_custom_call.1} parent=1 // pred_region
      %s91 = ssub.s32 1024, 1024
      %92 = vsyncadd [#allocation12], %s91
      %s93 = sshll.u32 [#allocation13], 4
      %s94 = int_to_ptr.vmem [resolvable:$true] %s93
      %99 = dma.hbm_to_vmem [thread:$0]  %s6, 1024, %s94, [#allocation12], 64, 64, 4
    $region29: #{tpu_custom_call.1} parent=1 // pred_fallthru
      _
    // Predicated region
    $region30: #{tpu_custom_call.1} parent=1 // pred_check
      _
    $region31: #{tpu_custom_call.1} parent=1 // pred_check_branch
      %101 = sbr.rel (0) target = $region33
    $region32: #{tpu_custom_call.1} parent=1 // pred_region
      _
    $region33: #{tpu_custom_call.1} parent=1 // pred_fallthru
      _
    // Predicated region
    $region34: #{tpu_custom_call.1} parent=1 // pred_check
      _
    $region35: #{tpu_custom_call.1} parent=1 // pred_check_branch
      %103 = sbr.rel (0) target = $region37
    $region36: #{tpu_custom_call.1} parent=1 // pred_region
      %104 = dma.done [#allocation3], 2048
    $region37: #{tpu_custom_call.1} parent=1 // pred_fallthru
      _
    // Predicated region
    $region38: #{tpu_custom_call.1} parent=1 // pred_check
      _
    $region39: #{tpu_custom_call.1} parent=1 // pred_check_branch
      %106 = sbr.rel (0) target = $region41
    $region40: #{tpu_custom_call.1} parent=1 // pred_region
      %107 = dma.done [#allocation6], 1024
    $region41: #{tpu_custom_call.1} parent=1 // pred_fallthru
      _
    // Predicated region
    $region42: #{tpu_custom_call.1} parent=1 // pred_check
      _
    $region43: #{tpu_custom_call.1} parent=1 // pred_check_branch
      %109 = sbr.rel (0) target = $region45
    $region44: #{tpu_custom_call.1} parent=1 // pred_region
      %110 = dma.done [#allocation6], 128
    $region45: #{tpu_custom_call.1} parent=1 // pred_fallthru
      _
    // Predicated region
    $region46: #{tpu_custom_call.1} parent=1 // pred_check
      _
    $region47: #{tpu_custom_call.1} parent=1 // pred_check_branch
      %112 = sbr.rel (0) target = $region49
    $region48: #{tpu_custom_call.1} parent=1 // pred_region
      %113 = dma.done [#allocation9], 1024
    $region49: #{tpu_custom_call.1} parent=1 // pred_fallthru
      _
    // Predicated region
    $region50: #{tpu_custom_call.1} parent=1 // pred_check
      _
    $region51: #{tpu_custom_call.1} parent=1 // pred_check_branch
      %115 = sbr.rel (0) target = $region53
    $region52: #{tpu_custom_call.1} parent=1 // pred_region
      %116 = dma.done [#allocation9], 1024
    $region53: #{tpu_custom_call.1} parent=1 // pred_fallthru
      _
    // Predicated region
    $region54: #{tpu_custom_call.1} parent=1 // pred_check
      _
    $region55: #{tpu_custom_call.1} parent=1 // pred_check_branch
      %118 = sbr.rel (0) target = $region57
    $region56: #{tpu_custom_call.1} parent=1 // pred_region
      %119 = dma.done [#allocation12], 1024
    $region57: #{tpu_custom_call.1} parent=1 // pred_fallthru
      _
    // Predicated region
    $region58: #{tpu_custom_call.1} parent=1 // pred_check
      _
    $region59: #{tpu_custom_call.1} parent=1 // pred_check_branch
      %121 = sbr.rel (0) target = $region61
    $region60: #{tpu_custom_call.1} parent=1 // pred_region
      %122 = dma.done [#allocation12], 1024
    $region61: #{tpu_custom_call.1} parent=1 // pred_fallthru
      _
    %v124 = vld [vmem:[#allocation2] sm:$0xff]
    %v125 = vld [vmem:[#allocation2 + $0x8] sm:$0xff]
    %v126 = vld [vmem:[#allocation2 + $0x10] sm:$0xff]
    %v127 = vld [vmem:[#allocation2 + $0x18] sm:$0xff]
    %v128 = vld [vmem:[#allocation2 + $0x20] sm:$0xff]
    %v129 = vld [vmem:[#allocation2 + $0x28] sm:$0xff]
    %v130 = vld [vmem:[#allocation2 + $0x30] sm:$0xff]
    %v131 = vld [vmem:[#allocation2 + $0x38] sm:$0xff]
    %v132 = vld [vmem:[#allocation2 + $0x40] sm:$0xff]
    %v133 = vld [vmem:[#allocation2 + $0x48] sm:$0xff]
    %v134 = vld [vmem:[#allocation2 + $0x50] sm:$0xff]
    %v135 = vld [vmem:[#allocation2 + $0x58] sm:$0xff]
    %v136 = vld [vmem:[#allocation2 + $0x60] sm:$0xff]
    %v137 = vld [vmem:[#allocation2 + $0x68] sm:$0xff]
    %v138 = vld [vmem:[#allocation2 + $0x70] sm:$0xff]
    %v139 = vld [vmem:[#allocation2 + $0x78] sm:$0xff]
    %v140 = vld [vmem:[#allocation5] sm:$0xf]
    %v141 = vld [vmem:[#allocation5 + $0x4] sm:$0xf]
    %v142 = vld [vmem:[#allocation5 + $0x8] sm:$0xf]
    %v143 = vld [vmem:[#allocation5 + $0xc] sm:$0xf]
    %v144 = vld [vmem:[#allocation5 + $0x10] sm:$0xf]
    %v145 = vld [vmem:[#allocation5 + $0x14] sm:$0xf]
    %v146 = vld [vmem:[#allocation5 + $0x18] sm:$0xf]
    %v147 = vld [vmem:[#allocation5 + $0x1c] sm:$0xf]
    %v148 = vld [vmem:[#allocation5 + $0x20] sm:$0xf]
    %v149 = vld [vmem:[#allocation5 + $0x24] sm:$0xf]
    %v150 = vld [vmem:[#allocation5 + $0x28] sm:$0xf]
    %v151 = vld [vmem:[#allocation5 + $0x2c] sm:$0xf]
    %v152 = vld [vmem:[#allocation5 + $0x30] sm:$0xf]
    %v153 = vld [vmem:[#allocation5 + $0x34] sm:$0xf]
    %v154 = vld [vmem:[#allocation5 + $0x38] sm:$0xf]
    %v155 = vld [vmem:[#allocation5 + $0x3c] sm:$0xf]
    %v156 = vld [vmem:[#allocation7] sm:$0xff]
    %v157 = vld [vmem:[#allocation8] sm:$0xf]
    %v158 = vld [vmem:[#allocation8 + $0x4] sm:$0xf]
    %v159 = vld [vmem:[#allocation8 + $0x8] sm:$0xf]
    %v160 = vld [vmem:[#allocation8 + $0xc] sm:$0xf]
    %v161 = vld [vmem:[#allocation8 + $0x10] sm:$0xf]
    %v162 = vld [vmem:[#allocation8 + $0x14] sm:$0xf]
    %v163 = vld [vmem:[#allocation8 + $0x18] sm:$0xf]
    %v164 = vld [vmem:[#allocation8 + $0x1c] sm:$0xf]
    %v165 = vld [vmem:[#allocation8 + $0x20] sm:$0xf]
    %v166 = vld [vmem:[#allocation8 + $0x24] sm:$0xf]
    %v167 = vld [vmem:[#allocation8 + $0x28] sm:$0xf]
    %v168 = vld [vmem:[#allocation8 + $0x2c] sm:$0xf]
    %v169 = vld [vmem:[#allocation8 + $0x30] sm:$0xf]
    %v170 = vld [vmem:[#allocation8 + $0x34] sm:$0xf]
    %v171 = vld [vmem:[#allocation8 + $0x38] sm:$0xf]
    %v172 = vld [vmem:[#allocation8 + $0x3c] sm:$0xf]
    %v173 = vlaneseq
    %v174 = vshrl.u32 %v173, 7
    %v175 = vsub.s32 0, %v174
    %v176 = vrot.slane %v156, %v175
    %v193 = vunpack.c.l.b16 %v140
    %v194 = vunpack.c.l.b16 %v141
    %v195 = vunpack.c.l.b16 %v142
    %v196 = vunpack.c.l.b16 %v143
    %v197 = vunpack.c.l.b16 %v144
    %v198 = vunpack.c.l.b16 %v145
    %v199 = vunpack.c.l.b16 %v146
    %v200 = vunpack.c.l.b16 %v147
    %v201 = vunpack.c.l.b16 %v148
    %v202 = vunpack.c.l.b16 %v149
    %v203 = vunpack.c.l.b16 %v150
    %v204 = vunpack.c.l.b16 %v151
    %v205 = vunpack.c.l.b16 %v152
    %v206 = vunpack.c.l.b16 %v153
    %v207 = vunpack.c.l.b16 %v154
    %v208 = vunpack.c.l.b16 %v155
    %v209 = vpack.c.b16 %v194, %v193
    %v210 = vpack.c.b16 %v196, %v195
    %v211 = vpack.c.b16 %v198, %v197
    %v212 = vpack.c.b16 %v200, %v199
    %v213 = vpack.c.b16 %v202, %v201
    %v214 = vpack.c.b16 %v204, %v203
    %v215 = vpack.c.b16 %v206, %v205
    %v216 = vpack.c.b16 %v208, %v207
    %v241 = vunpack.c.l.b16 %v157
    %v242 = vunpack.c.l.b16 %v158
    %v243 = vunpack.c.l.b16 %v159
    %v244 = vunpack.c.l.b16 %v160
    %v245 = vunpack.c.l.b16 %v161
    %v246 = vunpack.c.l.b16 %v162
    %v247 = vunpack.c.l.b16 %v163
    %v248 = vunpack.c.l.b16 %v164
    %v249 = vunpack.c.l.b16 %v165
    %v250 = vunpack.c.l.b16 %v166
    %v251 = vunpack.c.l.b16 %v167
    %v252 = vunpack.c.l.b16 %v168
    %v253 = vunpack.c.l.b16 %v169
    %v254 = vunpack.c.l.b16 %v170
    %v255 = vunpack.c.l.b16 %v171
    %v256 = vunpack.c.l.b16 %v172
    %v257 = vpack.c.b16 %v242, %v241
    %v258 = vpack.c.b16 %v244, %v243
    %v259 = vpack.c.b16 %v246, %v245
    %v260 = vpack.c.b16 %v248, %v247
    %v261 = vpack.c.b16 %v250, %v249
    %v262 = vpack.c.b16 %v252, %v251
    %v263 = vpack.c.b16 %v254, %v253
    %v264 = vpack.c.b16 %v256, %v255
    %273 = vmatprep.subr.bf16.mxu0 0
    %274 = vmatpush1.bf16.msra.mxu0 %v264
    %275 = vmatprep.subr.bf16.mxu0 0
    %276 = vmatpush1.bf16.msra.mxu0 %v263
    %277 = vmatprep.subr.bf16.mxu0 0
    %278 = vmatpush1.bf16.msra.mxu0 %v262
    %279 = vmatprep.subr.bf16.mxu0 0
    %280 = vmatpush1.bf16.msra.mxu0 %v261
    %281 = vmatprep.subr.bf16.mxu0 0
    %282 = vmatpush1.bf16.msra.mxu0 %v260
    %283 = vmatprep.subr.bf16.mxu0 0
    %284 = vmatpush1.bf16.msra.mxu0 %v259
    %285 = vmatprep.subr.bf16.mxu0 0
    %286 = vmatpush1.bf16.msra.mxu0 %v258
    %287 = vmatprep.subr.bf16.mxu0 0
    %288 = vmatpush1.bf16.msra.mxu0 %v257
    %289 = vmatprep.subr.bf16.mxu0 0
    %290 = vmatpush2.bf16.msra.mxu0 0
    %291 = vmatprep.subr.bf16.mxu0 0
    %292 = vmatpush2.bf16.msra.mxu0 0
    %293 = vmatprep.subr.bf16.mxu0 0
    %294 = vmatpush2.bf16.msra.mxu0 0
    %295 = vmatprep.subr.bf16.mxu0 0
    %296 = vmatpush2.bf16.msra.mxu0 0
    %297 = vmatprep.subr.bf16.mxu0 0
    %298 = vmatpush2.bf16.msra.mxu0 0
    %299 = vmatprep.subr.bf16.mxu0 0
    %300 = vmatpush2.bf16.msra.mxu0 0
    %301 = vmatprep.subr.bf16.mxu0 0
    %302 = vmatpush2.bf16.msra.mxu0 0
    %303 = vmatprep.subr.bf16.mxu0 0
    %304 = vmatpush2.bf16.msra.mxu0 0
    %305 = vmatprep.mubr.bf16.mxu0 0
    %306 = vmatmul.mubr.bf16.gmra.mxu0 %v209
    %v307 = vpop.f32.mrf.mxu0
    %v308 = vadd.f32 %v176, %v307
    %v309 = vpop.f32.mrf.mxu0
    %v310 = vpop.f32.mrf.mxu0
    %v311 = vadd.f32 %v176, %v310
    %v312 = vpop.f32.mrf.mxu0
    %313 = vmatprep.mubr.bf16.mxu0 0
    %314 = vmatmul.mubr.bf16.gmra.mxu0 %v210
    %v315 = vpop.f32.mrf.mxu0
    %v316 = vadd.f32 %v176, %v315
    %v317 = vpop.f32.mrf.mxu0
    %v318 = vpop.f32.mrf.mxu0
    %v319 = vadd.f32 %v176, %v318
    %v320 = vpop.f32.mrf.mxu0
    %321 = vmatprep.mubr.bf16.mxu0 0
    %322 = vmatmul.mubr.bf16.gmra.mxu0 %v211
    %v323 = vpop.f32.mrf.mxu0
    %v324 = vadd.f32 %v176, %v323
    %v325 = vpop.f32.mrf.mxu0
    %v326 = vpop.f32.mrf.mxu0
    %v327 = vadd.f32 %v176, %v326
    %v328 = vpop.f32.mrf.mxu0
    %329 = vmatprep.mubr.bf16.mxu0 0
    %330 = vmatmul.mubr.bf16.gmra.mxu0 %v212
    %v331 = vpop.f32.mrf.mxu0
    %v332 = vadd.f32 %v176, %v331
    %v333 = vpop.f32.mrf.mxu0
    %v334 = vpop.f32.mrf.mxu0
    %v335 = vadd.f32 %v176, %v334
    %v336 = vpop.f32.mrf.mxu0
    %337 = vmatprep.mubr.bf16.mxu0 0
    %338 = vmatmul.mubr.bf16.gmra.mxu0 %v213
    %v339 = vpop.f32.mrf.mxu0
    %v340 = vadd.f32 %v176, %v339
    %v341 = vpop.f32.mrf.mxu0
    %v342 = vpop.f32.mrf.mxu0
    %v343 = vadd.f32 %v176, %v342
    %v344 = vpop.f32.mrf.mxu0
    %345 = vmatprep.mubr.bf16.mxu0 0
    %346 = vmatmul.mubr.bf16.gmra.mxu0 %v214
    %v347 = vpop.f32.mrf.mxu0
    %v348 = vadd.f32 %v176, %v347
    %v349 = vpop.f32.mrf.mxu0
    %v350 = vpop.f32.mrf.mxu0
    %v351 = vadd.f32 %v176, %v350
    %v352 = vpop.f32.mrf.mxu0
    %353 = vmatprep.mubr.bf16.mxu0 0
    %354 = vmatmul.mubr.bf16.gmra.mxu0 %v215
    %v355 = vpop.f32.mrf.mxu0
    %v356 = vadd.f32 %v176, %v355
    %v357 = vpop.f32.mrf.mxu0
    %v358 = vpop.f32.mrf.mxu0
    %v359 = vadd.f32 %v176, %v358
    %v360 = vpop.f32.mrf.mxu0
    %361 = vmatprep.mubr.bf16.mxu0 0
    %362 = vmatmul.mubr.bf16.gmra.mxu0 %v216
    %v363 = vpop.f32.mrf.mxu0
    %v364 = vadd.f32 %v176, %v363
    %v365 = vpop.f32.mrf.mxu0
    %v366 = vpop.f32.mrf.mxu0
    %v367 = vadd.f32 %v176, %v366
    %v368 = vpop.f32.mrf.mxu0
    %369 = vdwg.mxu0
    %v370 = vmax.f32 %v308, 0.0
    %v371 = vmax.f32 %v311, 0.0
    %v372 = vmax.f32 %v316, 0.0
    %v373 = vmax.f32 %v319, 0.0
    %v374 = vmax.f32 %v324, 0.0
    %v375 = vmax.f32 %v327, 0.0
    %v376 = vmax.f32 %v332, 0.0
    %v377 = vmax.f32 %v335, 0.0
    %v378 = vmax.f32 %v340, 0.0
    %v379 = vmax.f32 %v343, 0.0
    %v380 = vmax.f32 %v348, 0.0
    %v381 = vmax.f32 %v351, 0.0
    %v382 = vmax.f32 %v356, 0.0
    %v383 = vmax.f32 %v359, 0.0
    %v384 = vmax.f32 %v364, 0.0
    %v385 = vmax.f32 %v367, 0.0
    %386 = vadd.xlane.f32.xlu0 %v370
    %v387 = vpop.xlane.xlu0 %386
    %388 = vadd.xlane.f32.xlu0 %v371
    %v389 = vpop.xlane.xlu0 %388
    %390 = vadd.xlane.f32.xlu0 %v372
    %v391 = vpop.xlane.xlu0 %390
    %392 = vadd.xlane.f32.xlu0 %v373
    %v393 = vpop.xlane.xlu0 %392
    %394 = vadd.xlane.f32.xlu0 %v374
    %v395 = vpop.xlane.xlu0 %394
    %396 = vadd.xlane.f32.xlu0 %v375
    %v397 = vpop.xlane.xlu0 %396
    %398 = vadd.xlane.f32.xlu0 %v376
    %v399 = vpop.xlane.xlu0 %398
    %400 = vadd.xlane.f32.xlu0 %v377
    %v401 = vpop.xlane.xlu0 %400
    %402 = vadd.xlane.f32.xlu0 %v378
    %v403 = vpop.xlane.xlu0 %402
    %404 = vadd.xlane.f32.xlu0 %v379
    %v405 = vpop.xlane.xlu0 %404
    %406 = vadd.xlane.f32.xlu0 %v380
    %v407 = vpop.xlane.xlu0 %406
    %408 = vadd.xlane.f32.xlu0 %v381
    %v409 = vpop.xlane.xlu0 %408
    %410 = vadd.xlane.f32.xlu0 %v382
    %v411 = vpop.xlane.xlu0 %410
    %412 = vadd.xlane.f32.xlu0 %v383
    %v413 = vpop.xlane.xlu0 %412
    %414 = vadd.xlane.f32.xlu0 %v384
    %v415 = vpop.xlane.xlu0 %414
    %416 = vadd.xlane.f32.xlu0 %v385
    %v417 = vpop.xlane.xlu0 %416
    %v418 = vmul.f32 %v370, %v370
    %v419 = vmul.f32 %v371, %v371
    %v420 = vmul.f32 %v372, %v372
    %v421 = vmul.f32 %v373, %v373
    %v422 = vmul.f32 %v374, %v374
    %v423 = vmul.f32 %v375, %v375
    %v424 = vmul.f32 %v376, %v376
    %v425 = vmul.f32 %v377, %v377
    %v426 = vmul.f32 %v378, %v378
    %v427 = vmul.f32 %v379, %v379
    %v428 = vmul.f32 %v380, %v380
    %v429 = vmul.f32 %v381, %v381
    %v430 = vmul.f32 %v382, %v382
    %v431 = vmul.f32 %v383, %v383
    %v432 = vmul.f32 %v384, %v384
    %v433 = vmul.f32 %v385, %v385
    %434 = vadd.xlane.f32.xlu0 %v418
    %v435 = vpop.xlane.xlu0 %434
    %436 = vadd.xlane.f32.xlu0 %v419
    %v437 = vpop.xlane.xlu0 %436
    %438 = vadd.xlane.f32.xlu0 %v420
    %v439 = vpop.xlane.xlu0 %438
    %440 = vadd.xlane.f32.xlu0 %v421
    %v441 = vpop.xlane.xlu0 %440
    %442 = vadd.xlane.f32.xlu0 %v422
    %v443 = vpop.xlane.xlu0 %442
    %444 = vadd.xlane.f32.xlu0 %v423
    %v445 = vpop.xlane.xlu0 %444
    %446 = vadd.xlane.f32.xlu0 %v424
    %v447 = vpop.xlane.xlu0 %446
    %448 = vadd.xlane.f32.xlu0 %v425
    %v449 = vpop.xlane.xlu0 %448
    %450 = vadd.xlane.f32.xlu0 %v426
    %v451 = vpop.xlane.xlu0 %450
    %452 = vadd.xlane.f32.xlu0 %v427
    %v453 = vpop.xlane.xlu0 %452
    %454 = vadd.xlane.f32.xlu0 %v428
    %v455 = vpop.xlane.xlu0 %454
    %456 = vadd.xlane.f32.xlu0 %v429
    %v457 = vpop.xlane.xlu0 %456
    %458 = vadd.xlane.f32.xlu0 %v430
    %v459 = vpop.xlane.xlu0 %458
    %460 = vadd.xlane.f32.xlu0 %v431
    %v461 = vpop.xlane.xlu0 %460
    %462 = vadd.xlane.f32.xlu0 %v432
    %v463 = vpop.xlane.xlu0 %462
    %464 = vadd.xlane.f32.xlu0 %v433
    %v465 = vpop.xlane.xlu0 %464
    %v466 = vmul.f32 %v387, 0.03125
    %v467 = vmul.f32 %v389, 0.03125
    %v468 = vmul.f32 %v391, 0.03125
    %v469 = vmul.f32 %v393, 0.03125
    %v470 = vmul.f32 %v395, 0.03125
    %v471 = vmul.f32 %v397, 0.03125
    %v472 = vmul.f32 %v399, 0.03125
    %v473 = vmul.f32 %v401, 0.03125
    %v474 = vmul.f32 %v403, 0.03125
    %v475 = vmul.f32 %v405, 0.03125
    %v476 = vmul.f32 %v407, 0.03125
    %v477 = vmul.f32 %v409, 0.03125
    %v478 = vmul.f32 %v411, 0.03125
    %v479 = vmul.f32 %v413, 0.03125
    %v480 = vmul.f32 %v415, 0.03125
    %v481 = vmul.f32 %v417, 0.03125
    %v482 = vmul.f32 %v435, 0.03125
    %v483 = vmul.f32 %v437, 0.03125
    %v484 = vmul.f32 %v439, 0.03125
    %v485 = vmul.f32 %v441, 0.03125
    %v486 = vmul.f32 %v443, 0.03125
    %v487 = vmul.f32 %v445, 0.03125
    %v488 = vmul.f32 %v447, 0.03125
    %v489 = vmul.f32 %v449, 0.03125
    %v490 = vmul.f32 %v451, 0.03125
    %v491 = vmul.f32 %v453, 0.03125
    %v492 = vmul.f32 %v455, 0.03125
    %v493 = vmul.f32 %v457, 0.03125
    %v494 = vmul.f32 %v459, 0.03125
    %v495 = vmul.f32 %v461, 0.03125
    %v496 = vmul.f32 %v463, 0.03125
    %v497 = vmul.f32 %v465, 0.03125
    %v498 = vmul.f32 %v466, %v466
    %v499 = vmul.f32 %v467, %v467
    %v500 = vmul.f32 %v468, %v468
    %v501 = vmul.f32 %v469, %v469
    %v502 = vmul.f32 %v470, %v470
    %v503 = vmul.f32 %v471, %v471
    %v504 = vmul.f32 %v472, %v472
    %v505 = vmul.f32 %v473, %v473
    %v506 = vmul.f32 %v474, %v474
    %v507 = vmul.f32 %v475, %v475
    %v508 = vmul.f32 %v476, %v476
    %v509 = vmul.f32 %v477, %v477
    %v510 = vmul.f32 %v478, %v478
    %v511 = vmul.f32 %v479, %v479
    %v512 = vmul.f32 %v480, %v480
    %v513 = vmul.f32 %v481, %v481
    %v514 = vsub.f32 %v482, %v498
    %v515 = vsub.f32 %v483, %v499
    %v516 = vsub.f32 %v484, %v500
    %v517 = vsub.f32 %v485, %v501
    %v518 = vsub.f32 %v486, %v502
    %v519 = vsub.f32 %v487, %v503
    %v520 = vsub.f32 %v488, %v504
    %v521 = vsub.f32 %v489, %v505
    %v522 = vsub.f32 %v490, %v506
    %v523 = vsub.f32 %v491, %v507
    %v524 = vsub.f32 %v492, %v508
    %v525 = vsub.f32 %v493, %v509
    %v526 = vsub.f32 %v494, %v510
    %v527 = vsub.f32 %v495, %v511
    %v528 = vsub.f32 %v496, %v512
    %v529 = vsub.f32 %v497, %v513
    %v530 = vmax.f32 %v514, 0.0
    %v531 = vmax.f32 %v515, 0.0
    %v532 = vmax.f32 %v516, 0.0
    %v533 = vmax.f32 %v517, 0.0
    %v534 = vmax.f32 %v518, 0.0
    %v535 = vmax.f32 %v519, 0.0
    %v536 = vmax.f32 %v520, 0.0
    %v537 = vmax.f32 %v521, 0.0
    %v538 = vmax.f32 %v522, 0.0
    %v539 = vmax.f32 %v523, 0.0
    %v540 = vmax.f32 %v524, 0.0
    %v541 = vmax.f32 %v525, 0.0
    %v542 = vmax.f32 %v526, 0.0
    %v543 = vmax.f32 %v527, 0.0
    %v544 = vmax.f32 %v528, 0.0
    %v545 = vmax.f32 %v529, 0.0
    %v546 = vsub.f32 %v370, %v466
    %v547 = vsub.f32 %v371, %v467
    %v548 = vsub.f32 %v372, %v468
    %v549 = vsub.f32 %v373, %v469
    %v550 = vsub.f32 %v374, %v470
    %v551 = vsub.f32 %v375, %v471
    %v552 = vsub.f32 %v376, %v472
    %v553 = vsub.f32 %v377, %v473
    %v554 = vsub.f32 %v378, %v474
    %v555 = vsub.f32 %v379, %v475
    %v556 = vsub.f32 %v380, %v476
    %v557 = vsub.f32 %v381, %v477
    %v558 = vsub.f32 %v382, %v478
    %v559 = vsub.f32 %v383, %v479
    %v560 = vsub.f32 %v384, %v480
    %v561 = vsub.f32 %v385, %v481
    %v562 = vadd.f32 %v530, 1e-12
    %v563 = vadd.f32 %v531, 1e-12
    %v564 = vadd.f32 %v532, 1e-12
    %v565 = vadd.f32 %v533, 1e-12
    %v566 = vadd.f32 %v534, 1e-12
    %v567 = vadd.f32 %v535, 1e-12
    %v568 = vadd.f32 %v536, 1e-12
    %v569 = vadd.f32 %v537, 1e-12
    %v570 = vadd.f32 %v538, 1e-12
    %v571 = vadd.f32 %v539, 1e-12
    %v572 = vadd.f32 %v540, 1e-12
    %v573 = vadd.f32 %v541, 1e-12
    %v574 = vadd.f32 %v542, 1e-12
    %v575 = vadd.f32 %v543, 1e-12
    %v576 = vadd.f32 %v544, 1e-12
    %v577 = vadd.f32 %v545, 1e-12
    %v578 = vrsqrt.pop %v562
    %v579 = vrsqrt.pop %v563
    %v580 = vrsqrt.pop %v564
    %v581 = vrsqrt.pop %v565
    %v582 = vrsqrt.pop %v566
    %v583 = vrsqrt.pop %v567
    %v584 = vrsqrt.pop %v568
    %v585 = vrsqrt.pop %v569
    %v586 = vrsqrt.pop %v570
    %v587 = vrsqrt.pop %v571
    %v588 = vrsqrt.pop %v572
    %v589 = vrsqrt.pop %v573
    %v590 = vrsqrt.pop %v574
    %v591 = vrsqrt.pop %v575
    %v592 = vrsqrt.pop %v576
    %v593 = vrsqrt.pop %v577
    %v594 = vmul.f32 %v546, %v578
    %v595 = vmul.f32 %v547, %v579
    %v596 = vmul.f32 %v548, %v580
    %v597 = vmul.f32 %v549, %v581
    %v598 = vmul.f32 %v550, %v582
    %v599 = vmul.f32 %v551, %v583
    %v600 = vmul.f32 %v552, %v584
    %v601 = vmul.f32 %v553, %v585
    %v602 = vmul.f32 %v554, %v586
    %v603 = vmul.f32 %v555, %v587
    %v604 = vmul.f32 %v556, %v588
    %v605 = vmul.f32 %v557, %v589
    %v606 = vmul.f32 %v558, %v590
    %v607 = vmul.f32 %v559, %v591
    %v608 = vmul.f32 %v560, %v592
    %v609 = vmul.f32 %v561, %v593
    %v610 = vlaneseq
    %v611 = vshrl.u32 %v610, 7
    %v612 = vsub.s32 1, %v611
    %v613 = vrot.slane %v156, %v612
    %v614 = vmul.f32 %v613, %v594
    %v615 = vmul.f32 %v613, %v595
    %v616 = vmul.f32 %v613, %v596
    %v617 = vmul.f32 %v613, %v597
    %v618 = vmul.f32 %v613, %v598
    %v619 = vmul.f32 %v613, %v599
    %v620 = vmul.f32 %v613, %v600
    %v621 = vmul.f32 %v613, %v601
    %v622 = vmul.f32 %v613, %v602
    %v623 = vmul.f32 %v613, %v603
    %v624 = vmul.f32 %v613, %v604
    %v625 = vmul.f32 %v613, %v605
    %v626 = vmul.f32 %v613, %v606
    %v627 = vmul.f32 %v613, %v607
    %v628 = vmul.f32 %v613, %v608
    %v629 = vmul.f32 %v613, %v609
    %v630 = vlaneseq
    %v631 = vshrl.u32 %v630, 7
    %v632 = vsub.s32 2, %v631
    %v633 = vrot.slane %v156, %v632
    %v634 = vadd.f32 %v614, %v633
    %v635 = vadd.f32 %v615, %v633
    %v636 = vadd.f32 %v616, %v633
    %v637 = vadd.f32 %v617, %v633
    %v638 = vadd.f32 %v618, %v633
    %v639 = vadd.f32 %v619, %v633
    %v640 = vadd.f32 %v620, %v633
    %v641 = vadd.f32 %v621, %v633
    %v642 = vadd.f32 %v622, %v633
    %v643 = vadd.f32 %v623, %v633
    %v644 = vadd.f32 %v624, %v633
    %v645 = vadd.f32 %v625, %v633
    %v646 = vadd.f32 %v626, %v633
    %v647 = vadd.f32 %v627, %v633
    %v648 = vadd.f32 %v628, %v633
    %v649 = vadd.f32 %v629, %v633
    %v650 = vpack.c.bf16 %v635, %v634
    %v651 = vpack.c.bf16 %v637, %v636
    %v652 = vpack.c.bf16 %v639, %v638
    %v653 = vpack.c.bf16 %v641, %v640
    %v654 = vpack.c.bf16 %v643, %v642
    %v655 = vpack.c.bf16 %v645, %v644
    %v656 = vpack.c.bf16 %v647, %v646
    %v657 = vpack.c.bf16 %v649, %v648
    %v658 = vld [vmem:[#allocation10] sm:$0xf]
    %v659 = vld [vmem:[#allocation10 + $0x4] sm:$0xf]
    %v660 = vld [vmem:[#allocation10 + $0x8] sm:$0xf]
    %v661 = vld [vmem:[#allocation10 + $0xc] sm:$0xf]
    %v662 = vld [vmem:[#allocation10 + $0x10] sm:$0xf]
    %v663 = vld [vmem:[#allocation10 + $0x14] sm:$0xf]
    %v664 = vld [vmem:[#allocation10 + $0x18] sm:$0xf]
    %v665 = vld [vmem:[#allocation10 + $0x1c] sm:$0xf]
    %v666 = vld [vmem:[#allocation10 + $0x20] sm:$0xf]
    %v667 = vld [vmem:[#allocation10 + $0x24] sm:$0xf]
    %v668 = vld [vmem:[#allocation10 + $0x28] sm:$0xf]
    %v669 = vld [vmem:[#allocation10 + $0x2c] sm:$0xf]
    %v670 = vld [vmem:[#allocation10 + $0x30] sm:$0xf]
    %v671 = vld [vmem:[#allocation10 + $0x34] sm:$0xf]
    %v672 = vld [vmem:[#allocation10 + $0x38] sm:$0xf]
    %v673 = vld [vmem:[#allocation10 + $0x3c] sm:$0xf]
    %v674 = vlaneseq
    %v675 = vshrl.u32 %v674, 7
    %v676 = vsub.s32 3, %v675
    %v677 = vrot.slane %v156, %v676
    %v694 = vunpack.c.l.b16 %v658
    %v695 = vunpack.c.l.b16 %v659
    %v696 = vunpack.c.l.b16 %v660
    %v697 = vunpack.c.l.b16 %v661
    %v698 = vunpack.c.l.b16 %v662
    %v699 = vunpack.c.l.b16 %v663
    %v700 = vunpack.c.l.b16 %v664
    %v701 = vunpack.c.l.b16 %v665
    %v702 = vunpack.c.l.b16 %v666
    %v703 = vunpack.c.l.b16 %v667
    %v704 = vunpack.c.l.b16 %v668
    %v705 = vunpack.c.l.b16 %v669
    %v706 = vunpack.c.l.b16 %v670
    %v707 = vunpack.c.l.b16 %v671
    %v708 = vunpack.c.l.b16 %v672
    %v709 = vunpack.c.l.b16 %v673
    %v710 = vpack.c.b16 %v695, %v694
    %v711 = vpack.c.b16 %v697, %v696
    %v712 = vpack.c.b16 %v699, %v698
    %v713 = vpack.c.b16 %v701, %v700
    %v714 = vpack.c.b16 %v703, %v702
    %v715 = vpack.c.b16 %v705, %v704
    %v716 = vpack.c.b16 %v707, %v706
    %v717 = vpack.c.b16 %v709, %v708
    %726 = vmatprep.subr.bf16.mxu0 0
    %727 = vmatpush1.bf16.msra.mxu0 %v717
    %728 = vmatprep.subr.bf16.mxu0 0
    %729 = vmatpush1.bf16.msra.mxu0 %v716
    %730 = vmatprep.subr.bf16.mxu0 0
    %731 = vmatpush1.bf16.msra.mxu0 %v715
    %732 = vmatprep.subr.bf16.mxu0 0
    %733 = vmatpush1.bf16.msra.mxu0 %v714
    %734 = vmatprep.subr.bf16.mxu0 0
    %735 = vmatpush1.bf16.msra.mxu0 %v713
    %736 = vmatprep.subr.bf16.mxu0 0
    %737 = vmatpush1.bf16.msra.mxu0 %v712
    %738 = vmatprep.subr.bf16.mxu0 0
    %739 = vmatpush1.bf16.msra.mxu0 %v711
    %740 = vmatprep.subr.bf16.mxu0 0
    %741 = vmatpush1.bf16.msra.mxu0 %v710
    %742 = vmatprep.subr.bf16.mxu0 0
    %743 = vmatpush2.bf16.msra.mxu0 0
    %744 = vmatprep.subr.bf16.mxu0 0
    %745 = vmatpush2.bf16.msra.mxu0 0
    %746 = vmatprep.subr.bf16.mxu0 0
    %747 = vmatpush2.bf16.msra.mxu0 0
    %748 = vmatprep.subr.bf16.mxu0 0
    %749 = vmatpush2.bf16.msra.mxu0 0
    %750 = vmatprep.subr.bf16.mxu0 0
    %751 = vmatpush2.bf16.msra.mxu0 0
    %752 = vmatprep.subr.bf16.mxu0 0
    %753 = vmatpush2.bf16.msra.mxu0 0
    %754 = vmatprep.subr.bf16.mxu0 0
    %755 = vmatpush2.bf16.msra.mxu0 0
    %756 = vmatprep.subr.bf16.mxu0 0
    %757 = vmatpush2.bf16.msra.mxu0 0
    %758 = vmatprep.mubr.bf16.mxu0 0
    %759 = vmatmul.mubr.bf16.gmra.mxu0 %v650
    %v760 = vpop.f32.mrf.mxu0
    %v761 = vadd.f32 %v677, %v760
    %v762 = vpop.f32.mrf.mxu0
    %v763 = vpop.f32.mrf.mxu0
    %v764 = vadd.f32 %v677, %v763
    %v765 = vpop.f32.mrf.mxu0
    %766 = vmatprep.mubr.bf16.mxu0 0
    %767 = vmatmul.mubr.bf16.gmra.mxu0 %v651
    %v768 = vpop.f32.mrf.mxu0
    %v769 = vadd.f32 %v677, %v768
    %v770 = vpop.f32.mrf.mxu0
    %v771 = vpop.f32.mrf.mxu0
    %v772 = vadd.f32 %v677, %v771
    %v773 = vpop.f32.mrf.mxu0
    %774 = vmatprep.mubr.bf16.mxu0 0
    %775 = vmatmul.mubr.bf16.gmra.mxu0 %v652
    %v776 = vpop.f32.mrf.mxu0
    %v777 = vadd.f32 %v677, %v776
    %v778 = vpop.f32.mrf.mxu0
    %v779 = vpop.f32.mrf.mxu0
    %v780 = vadd.f32 %v677, %v779
    %v781 = vpop.f32.mrf.mxu0
    %782 = vmatprep.mubr.bf16.mxu0 0
    %783 = vmatmul.mubr.bf16.gmra.mxu0 %v653
    %v784 = vpop.f32.mrf.mxu0
    %v785 = vadd.f32 %v677, %v784
    %v786 = vpop.f32.mrf.mxu0
    %v787 = vpop.f32.mrf.mxu0
    %v788 = vadd.f32 %v677, %v787
    %v789 = vpop.f32.mrf.mxu0
    %790 = vmatprep.mubr.bf16.mxu0 0
    %791 = vmatmul.mubr.bf16.gmra.mxu0 %v654
    %v792 = vpop.f32.mrf.mxu0
    %v793 = vadd.f32 %v677, %v792
    %v794 = vpop.f32.mrf.mxu0
    %v795 = vpop.f32.mrf.mxu0
    %v796 = vadd.f32 %v677, %v795
    %v797 = vpop.f32.mrf.mxu0
    %798 = vmatprep.mubr.bf16.mxu0 0
    %799 = vmatmul.mubr.bf16.gmra.mxu0 %v655
    %v800 = vpop.f32.mrf.mxu0
    %v801 = vadd.f32 %v677, %v800
    %v802 = vpop.f32.mrf.mxu0
    %v803 = vpop.f32.mrf.mxu0
    %v804 = vadd.f32 %v677, %v803
    %v805 = vpop.f32.mrf.mxu0
    %806 = vmatprep.mubr.bf16.mxu0 0
    %807 = vmatmul.mubr.bf16.gmra.mxu0 %v656
    %v808 = vpop.f32.mrf.mxu0
    %v809 = vadd.f32 %v677, %v808
    %v810 = vpop.f32.mrf.mxu0
    %v811 = vpop.f32.mrf.mxu0
    %v812 = vadd.f32 %v677, %v811
    %v813 = vpop.f32.mrf.mxu0
    %814 = vmatprep.mubr.bf16.mxu0 0
    %815 = vmatmul.mubr.bf16.gmra.mxu0 %v657
    %v816 = vpop.f32.mrf.mxu0
    %v817 = vadd.f32 %v677, %v816
    %v818 = vpop.f32.mrf.mxu0
    %v819 = vpop.f32.mrf.mxu0
    %v820 = vadd.f32 %v677, %v819
    %v821 = vpop.f32.mrf.mxu0
    %822 = vdwg.mxu0
    %v823 = vadd.f32 %v124, %v761
    %v824 = vadd.f32 %v125, %v764
    %v825 = vadd.f32 %v126, %v769
    %v826 = vadd.f32 %v127, %v772
    %v827 = vadd.f32 %v128, %v777
    %v828 = vadd.f32 %v129, %v780
    %v829 = vadd.f32 %v130, %v785
    %v830 = vadd.f32 %v131, %v788
    %v831 = vadd.f32 %v132, %v793
    %v832 = vadd.f32 %v133, %v796
    %v833 = vadd.f32 %v134, %v801
    %v834 = vadd.f32 %v135, %v804
    %v835 = vadd.f32 %v136, %v809
    %v836 = vadd.f32 %v137, %v812
    %v837 = vadd.f32 %v138, %v817
    %v838 = vadd.f32 %v139, %v820
    %v839 = vpack.c.bf16 %v824, %v823
    %v840 = vpack.c.bf16 %v826, %v825
    %v841 = vpack.c.bf16 %v828, %v827
    %v842 = vpack.c.bf16 %v830, %v829
    %v843 = vpack.c.bf16 %v832, %v831
    %v844 = vpack.c.bf16 %v834, %v833
    %v845 = vpack.c.bf16 %v836, %v835
    %v846 = vpack.c.bf16 %v838, %v837
    %v847 = vld [vmem:[#allocation11] sm:$0xf]
    %v848 = vld [vmem:[#allocation11 + $0x4] sm:$0xf]
    %v849 = vld [vmem:[#allocation11 + $0x8] sm:$0xf]
    %v850 = vld [vmem:[#allocation11 + $0xc] sm:$0xf]
    %v851 = vld [vmem:[#allocation11 + $0x10] sm:$0xf]
    %v852 = vld [vmem:[#allocation11 + $0x14] sm:$0xf]
    %v853 = vld [vmem:[#allocation11 + $0x18] sm:$0xf]
    %v854 = vld [vmem:[#allocation11 + $0x1c] sm:$0xf]
    %v855 = vld [vmem:[#allocation11 + $0x20] sm:$0xf]
    %v856 = vld [vmem:[#allocation11 + $0x24] sm:$0xf]
    %v857 = vld [vmem:[#allocation11 + $0x28] sm:$0xf]
    %v858 = vld [vmem:[#allocation11 + $0x2c] sm:$0xf]
    %v859 = vld [vmem:[#allocation11 + $0x30] sm:$0xf]
    %v860 = vld [vmem:[#allocation11 + $0x34] sm:$0xf]
    %v861 = vld [vmem:[#allocation11 + $0x38] sm:$0xf]
    %v862 = vld [vmem:[#allocation11 + $0x3c] sm:$0xf]
    %v863 = vlaneseq
    %v864 = vshrl.u32 %v863, 7
    %v865 = vsub.s32 4, %v864
    %v866 = vrot.slane %v156, %v865
    %v883 = vunpack.c.l.b16 %v847
    %v884 = vunpack.c.l.b16 %v848
    %v885 = vunpack.c.l.b16 %v849
    %v886 = vunpack.c.l.b16 %v850
    %v887 = vunpack.c.l.b16 %v851
    %v888 = vunpack.c.l.b16 %v852
    %v889 = vunpack.c.l.b16 %v853
    %v890 = vunpack.c.l.b16 %v854
    %v891 = vunpack.c.l.b16 %v855
    %v892 = vunpack.c.l.b16 %v856
    %v893 = vunpack.c.l.b16 %v857
    %v894 = vunpack.c.l.b16 %v858
    %v895 = vunpack.c.l.b16 %v859
    %v896 = vunpack.c.l.b16 %v860
    %v897 = vunpack.c.l.b16 %v861
    %v898 = vunpack.c.l.b16 %v862
    %v899 = vpack.c.b16 %v884, %v883
    %v900 = vpack.c.b16 %v886, %v885
    %v901 = vpack.c.b16 %v888, %v887
    %v902 = vpack.c.b16 %v890, %v889
    %v903 = vpack.c.b16 %v892, %v891
    %v904 = vpack.c.b16 %v894, %v893
    %v905 = vpack.c.b16 %v896, %v895
    %v906 = vpack.c.b16 %v898, %v897
    %915 = vmatprep.subr.bf16.mxu0 0
    %916 = vmatpush1.bf16.msra.mxu0 %v906
    %917 = vmatprep.subr.bf16.mxu0 0
    %918 = vmatpush1.bf16.msra.mxu0 %v905
    %919 = vmatprep.subr.bf16.mxu0 0
    %920 = vmatpush1.bf16.msra.mxu0 %v904
    %921 = vmatprep.subr.bf16.mxu0 0
    %922 = vmatpush1.bf16.msra.mxu0 %v903
    %923 = vmatprep.subr.bf16.mxu0 0
    %924 = vmatpush1.bf16.msra.mxu0 %v902
    %925 = vmatprep.subr.bf16.mxu0 0
    %926 = vmatpush1.bf16.msra.mxu0 %v901
    %927 = vmatprep.subr.bf16.mxu0 0
    %928 = vmatpush1.bf16.msra.mxu0 %v900
    %929 = vmatprep.subr.bf16.mxu0 0
    %930 = vmatpush1.bf16.msra.mxu0 %v899
    %931 = vmatprep.subr.bf16.mxu0 0
    %932 = vmatpush2.bf16.msra.mxu0 0
    %933 = vmatprep.subr.bf16.mxu0 0
    %934 = vmatpush2.bf16.msra.mxu0 0
    %935 = vmatprep.subr.bf16.mxu0 0
    %936 = vmatpush2.bf16.msra.mxu0 0
    %937 = vmatprep.subr.bf16.mxu0 0
    %938 = vmatpush2.bf16.msra.mxu0 0
    %939 = vmatprep.subr.bf16.mxu0 0
    %940 = vmatpush2.bf16.msra.mxu0 0
    %941 = vmatprep.subr.bf16.mxu0 0
    %942 = vmatpush2.bf16.msra.mxu0 0
    %943 = vmatprep.subr.bf16.mxu0 0
    %944 = vmatpush2.bf16.msra.mxu0 0
    %945 = vmatprep.subr.bf16.mxu0 0
    %946 = vmatpush2.bf16.msra.mxu0 0
    %947 = vmatprep.mubr.bf16.mxu0 0
    %948 = vmatmul.mubr.bf16.gmra.mxu0 %v839
    %v949 = vpop.f32.mrf.mxu0
    %v950 = vadd.f32 %v866, %v949
    %v951 = vpop.f32.mrf.mxu0
    %v952 = vpop.f32.mrf.mxu0
    %v953 = vadd.f32 %v866, %v952
    %v954 = vpop.f32.mrf.mxu0
    %955 = vmatprep.mubr.bf16.mxu0 0
    %956 = vmatmul.mubr.bf16.gmra.mxu0 %v840
    %v957 = vpop.f32.mrf.mxu0
    %v958 = vadd.f32 %v866, %v957
    %v959 = vpop.f32.mrf.mxu0
    %v960 = vpop.f32.mrf.mxu0
    %v961 = vadd.f32 %v866, %v960
    %v962 = vpop.f32.mrf.mxu0
    %963 = vmatprep.mubr.bf16.mxu0 0
    %964 = vmatmul.mubr.bf16.gmra.mxu0 %v841
    %v965 = vpop.f32.mrf.mxu0
    %v966 = vadd.f32 %v866, %v965
    %v967 = vpop.f32.mrf.mxu0
    %v968 = vpop.f32.mrf.mxu0
    %v969 = vadd.f32 %v866, %v968
    %v970 = vpop.f32.mrf.mxu0
    %971 = vmatprep.mubr.bf16.mxu0 0
    %972 = vmatmul.mubr.bf16.gmra.mxu0 %v842
    %v973 = vpop.f32.mrf.mxu0
    %v974 = vadd.f32 %v866, %v973
    %v975 = vpop.f32.mrf.mxu0
    %v976 = vpop.f32.mrf.mxu0
    %v977 = vadd.f32 %v866, %v976
    %v978 = vpop.f32.mrf.mxu0
    %979 = vmatprep.mubr.bf16.mxu0 0
    %980 = vmatmul.mubr.bf16.gmra.mxu0 %v843
    %v981 = vpop.f32.mrf.mxu0
    %v982 = vadd.f32 %v866, %v981
    %v983 = vpop.f32.mrf.mxu0
    %v984 = vpop.f32.mrf.mxu0
    %v985 = vadd.f32 %v866, %v984
    %v986 = vpop.f32.mrf.mxu0
    %987 = vmatprep.mubr.bf16.mxu0 0
    %988 = vmatmul.mubr.bf16.gmra.mxu0 %v844
    %v989 = vpop.f32.mrf.mxu0
    %v990 = vadd.f32 %v866, %v989
    %v991 = vpop.f32.mrf.mxu0
    %v992 = vpop.f32.mrf.mxu0
    %v993 = vadd.f32 %v866, %v992
    %v994 = vpop.f32.mrf.mxu0
    %995 = vmatprep.mubr.bf16.mxu0 0
    %996 = vmatmul.mubr.bf16.gmra.mxu0 %v845
    %v997 = vpop.f32.mrf.mxu0
    %v998 = vadd.f32 %v866, %v997
    %v999 = vpop.f32.mrf.mxu0
    %v1000 = vpop.f32.mrf.mxu0
    %v1001 = vadd.f32 %v866, %v1000
    %v1002 = vpop.f32.mrf.mxu0
    %1003 = vmatprep.mubr.bf16.mxu0 0
    %1004 = vmatmul.mubr.bf16.gmra.mxu0 %v846
    %v1005 = vpop.f32.mrf.mxu0
    %v1006 = vadd.f32 %v866, %v1005
    %v1007 = vpop.f32.mrf.mxu0
    %v1008 = vpop.f32.mrf.mxu0
    %v1009 = vadd.f32 %v866, %v1008
    %v1010 = vpop.f32.mrf.mxu0
    %1011 = vdwg.mxu0
    %v1012 = vmax.f32 %v950, 0.0
    %v1013 = vmax.f32 %v953, 0.0
    %v1014 = vmax.f32 %v958, 0.0
    %v1015 = vmax.f32 %v961, 0.0
    %v1016 = vmax.f32 %v966, 0.0
    %v1017 = vmax.f32 %v969, 0.0
    %v1018 = vmax.f32 %v974, 0.0
    %v1019 = vmax.f32 %v977, 0.0
    %v1020 = vmax.f32 %v982, 0.0
    %v1021 = vmax.f32 %v985, 0.0
    %v1022 = vmax.f32 %v990, 0.0
    %v1023 = vmax.f32 %v993, 0.0
    %v1024 = vmax.f32 %v998, 0.0
    %v1025 = vmax.f32 %v1001, 0.0
    %v1026 = vmax.f32 %v1006, 0.0
    %v1027 = vmax.f32 %v1009, 0.0
    %1028 = vadd.xlane.f32.xlu0 %v1012
    %v1029 = vpop.xlane.xlu0 %1028
    %1030 = vadd.xlane.f32.xlu0 %v1013
    %v1031 = vpop.xlane.xlu0 %1030
    %1032 = vadd.xlane.f32.xlu0 %v1014
    %v1033 = vpop.xlane.xlu0 %1032
    %1034 = vadd.xlane.f32.xlu0 %v1015
    %v1035 = vpop.xlane.xlu0 %1034
    %1036 = vadd.xlane.f32.xlu0 %v1016
    %v1037 = vpop.xlane.xlu0 %1036
    %1038 = vadd.xlane.f32.xlu0 %v1017
    %v1039 = vpop.xlane.xlu0 %1038
    %1040 = vadd.xlane.f32.xlu0 %v1018
    %v1041 = vpop.xlane.xlu0 %1040
    %1042 = vadd.xlane.f32.xlu0 %v1019
    %v1043 = vpop.xlane.xlu0 %1042
    %1044 = vadd.xlane.f32.xlu0 %v1020
    %v1045 = vpop.xlane.xlu0 %1044
    %1046 = vadd.xlane.f32.xlu0 %v1021
    %v1047 = vpop.xlane.xlu0 %1046
    %1048 = vadd.xlane.f32.xlu0 %v1022
    %v1049 = vpop.xlane.xlu0 %1048
    %1050 = vadd.xlane.f32.xlu0 %v1023
    %v1051 = vpop.xlane.xlu0 %1050
    %1052 = vadd.xlane.f32.xlu0 %v1024
    %v1053 = vpop.xlane.xlu0 %1052
    %1054 = vadd.xlane.f32.xlu0 %v1025
    %v1055 = vpop.xlane.xlu0 %1054
    %1056 = vadd.xlane.f32.xlu0 %v1026
    %v1057 = vpop.xlane.xlu0 %1056
    %1058 = vadd.xlane.f32.xlu0 %v1027
    %v1059 = vpop.xlane.xlu0 %1058
    %v1060 = vmul.f32 %v1012, %v1012
    %v1061 = vmul.f32 %v1013, %v1013
    %v1062 = vmul.f32 %v1014, %v1014
    %v1063 = vmul.f32 %v1015, %v1015
    %v1064 = vmul.f32 %v1016, %v1016
    %v1065 = vmul.f32 %v1017, %v1017
    %v1066 = vmul.f32 %v1018, %v1018
    %v1067 = vmul.f32 %v1019, %v1019
    %v1068 = vmul.f32 %v1020, %v1020
    %v1069 = vmul.f32 %v1021, %v1021
    %v1070 = vmul.f32 %v1022, %v1022
    %v1071 = vmul.f32 %v1023, %v1023
    %v1072 = vmul.f32 %v1024, %v1024
    %v1073 = vmul.f32 %v1025, %v1025
    %v1074 = vmul.f32 %v1026, %v1026
    %v1075 = vmul.f32 %v1027, %v1027
    %1076 = vadd.xlane.f32.xlu0 %v1060
    %v1077 = vpop.xlane.xlu0 %1076
    %1078 = vadd.xlane.f32.xlu0 %v1061
    %v1079 = vpop.xlane.xlu0 %1078
    %1080 = vadd.xlane.f32.xlu0 %v1062
    %v1081 = vpop.xlane.xlu0 %1080
    %1082 = vadd.xlane.f32.xlu0 %v1063
    %v1083 = vpop.xlane.xlu0 %1082
    %1084 = vadd.xlane.f32.xlu0 %v1064
    %v1085 = vpop.xlane.xlu0 %1084
    %1086 = vadd.xlane.f32.xlu0 %v1065
    %v1087 = vpop.xlane.xlu0 %1086
    %1088 = vadd.xlane.f32.xlu0 %v1066
    %v1089 = vpop.xlane.xlu0 %1088
    %1090 = vadd.xlane.f32.xlu0 %v1067
    %v1091 = vpop.xlane.xlu0 %1090
    %1092 = vadd.xlane.f32.xlu0 %v1068
    %v1093 = vpop.xlane.xlu0 %1092
    %1094 = vadd.xlane.f32.xlu0 %v1069
    %v1095 = vpop.xlane.xlu0 %1094
    %1096 = vadd.xlane.f32.xlu0 %v1070
    %v1097 = vpop.xlane.xlu0 %1096
    %1098 = vadd.xlane.f32.xlu0 %v1071
    %v1099 = vpop.xlane.xlu0 %1098
    %1100 = vadd.xlane.f32.xlu0 %v1072
    %v1101 = vpop.xlane.xlu0 %1100
    %1102 = vadd.xlane.f32.xlu0 %v1073
    %v1103 = vpop.xlane.xlu0 %1102
    %1104 = vadd.xlane.f32.xlu0 %v1074
    %v1105 = vpop.xlane.xlu0 %1104
    %1106 = vadd.xlane.f32.xlu0 %v1075
    %v1107 = vpop.xlane.xlu0 %1106
    %v1108 = vmul.f32 %v1029, 0.03125
    %v1109 = vmul.f32 %v1031, 0.03125
    %v1110 = vmul.f32 %v1033, 0.03125
    %v1111 = vmul.f32 %v1035, 0.03125
    %v1112 = vmul.f32 %v1037, 0.03125
    %v1113 = vmul.f32 %v1039, 0.03125
    %v1114 = vmul.f32 %v1041, 0.03125
    %v1115 = vmul.f32 %v1043, 0.03125
    %v1116 = vmul.f32 %v1045, 0.03125
    %v1117 = vmul.f32 %v1047, 0.03125
    %v1118 = vmul.f32 %v1049, 0.03125
    %v1119 = vmul.f32 %v1051, 0.03125
    %v1120 = vmul.f32 %v1053, 0.03125
    %v1121 = vmul.f32 %v1055, 0.03125
    %v1122 = vmul.f32 %v1057, 0.03125
    %v1123 = vmul.f32 %v1059, 0.03125
    %v1124 = vmul.f32 %v1077, 0.03125
    %v1125 = vmul.f32 %v1079, 0.03125
    %v1126 = vmul.f32 %v1081, 0.03125
    %v1127 = vmul.f32 %v1083, 0.03125
    %v1128 = vmul.f32 %v1085, 0.03125
    %v1129 = vmul.f32 %v1087, 0.03125
    %v1130 = vmul.f32 %v1089, 0.03125
    %v1131 = vmul.f32 %v1091, 0.03125
    %v1132 = vmul.f32 %v1093, 0.03125
    %v1133 = vmul.f32 %v1095, 0.03125
    %v1134 = vmul.f32 %v1097, 0.03125
    %v1135 = vmul.f32 %v1099, 0.03125
    %v1136 = vmul.f32 %v1101, 0.03125
    %v1137 = vmul.f32 %v1103, 0.03125
    %v1138 = vmul.f32 %v1105, 0.03125
    %v1139 = vmul.f32 %v1107, 0.03125
    %v1140 = vmul.f32 %v1108, %v1108
    %v1141 = vmul.f32 %v1109, %v1109
    %v1142 = vmul.f32 %v1110, %v1110
    %v1143 = vmul.f32 %v1111, %v1111
    %v1144 = vmul.f32 %v1112, %v1112
    %v1145 = vmul.f32 %v1113, %v1113
    %v1146 = vmul.f32 %v1114, %v1114
    %v1147 = vmul.f32 %v1115, %v1115
    %v1148 = vmul.f32 %v1116, %v1116
    %v1149 = vmul.f32 %v1117, %v1117
    %v1150 = vmul.f32 %v1118, %v1118
    %v1151 = vmul.f32 %v1119, %v1119
    %v1152 = vmul.f32 %v1120, %v1120
    %v1153 = vmul.f32 %v1121, %v1121
    %v1154 = vmul.f32 %v1122, %v1122
    %v1155 = vmul.f32 %v1123, %v1123
    %v1156 = vsub.f32 %v1124, %v1140
    %v1157 = vsub.f32 %v1125, %v1141
    %v1158 = vsub.f32 %v1126, %v1142
    %v1159 = vsub.f32 %v1127, %v1143
    %v1160 = vsub.f32 %v1128, %v1144
    %v1161 = vsub.f32 %v1129, %v1145
    %v1162 = vsub.f32 %v1130, %v1146
    %v1163 = vsub.f32 %v1131, %v1147
    %v1164 = vsub.f32 %v1132, %v1148
    %v1165 = vsub.f32 %v1133, %v1149
    %v1166 = vsub.f32 %v1134, %v1150
    %v1167 = vsub.f32 %v1135, %v1151
    %v1168 = vsub.f32 %v1136, %v1152
    %v1169 = vsub.f32 %v1137, %v1153
    %v1170 = vsub.f32 %v1138, %v1154
    %v1171 = vsub.f32 %v1139, %v1155
    %v1172 = vmax.f32 %v1156, 0.0
    %v1173 = vmax.f32 %v1157, 0.0
    %v1174 = vmax.f32 %v1158, 0.0
    %v1175 = vmax.f32 %v1159, 0.0
    %v1176 = vmax.f32 %v1160, 0.0
    %v1177 = vmax.f32 %v1161, 0.0
    %v1178 = vmax.f32 %v1162, 0.0
    %v1179 = vmax.f32 %v1163, 0.0
    %v1180 = vmax.f32 %v1164, 0.0
    %v1181 = vmax.f32 %v1165, 0.0
    %v1182 = vmax.f32 %v1166, 0.0
    %v1183 = vmax.f32 %v1167, 0.0
    %v1184 = vmax.f32 %v1168, 0.0
    %v1185 = vmax.f32 %v1169, 0.0
    %v1186 = vmax.f32 %v1170, 0.0
    %v1187 = vmax.f32 %v1171, 0.0
    %v1188 = vsub.f32 %v1012, %v1108
    %v1189 = vsub.f32 %v1013, %v1109
    %v1190 = vsub.f32 %v1014, %v1110
    %v1191 = vsub.f32 %v1015, %v1111
    %v1192 = vsub.f32 %v1016, %v1112
    %v1193 = vsub.f32 %v1017, %v1113
    %v1194 = vsub.f32 %v1018, %v1114
    %v1195 = vsub.f32 %v1019, %v1115
    %v1196 = vsub.f32 %v1020, %v1116
    %v1197 = vsub.f32 %v1021, %v1117
    %v1198 = vsub.f32 %v1022, %v1118
    %v1199 = vsub.f32 %v1023, %v1119
    %v1200 = vsub.f32 %v1024, %v1120
    %v1201 = vsub.f32 %v1025, %v1121
    %v1202 = vsub.f32 %v1026, %v1122
    %v1203 = vsub.f32 %v1027, %v1123
    %v1204 = vadd.f32 %v1172, 1e-12
    %v1205 = vadd.f32 %v1173, 1e-12
    %v1206 = vadd.f32 %v1174, 1e-12
    %v1207 = vadd.f32 %v1175, 1e-12
    %v1208 = vadd.f32 %v1176, 1e-12
    %v1209 = vadd.f32 %v1177, 1e-12
    %v1210 = vadd.f32 %v1178, 1e-12
    %v1211 = vadd.f32 %v1179, 1e-12
    %v1212 = vadd.f32 %v1180, 1e-12
    %v1213 = vadd.f32 %v1181, 1e-12
    %v1214 = vadd.f32 %v1182, 1e-12
    %v1215 = vadd.f32 %v1183, 1e-12
    %v1216 = vadd.f32 %v1184, 1e-12
    %v1217 = vadd.f32 %v1185, 1e-12
    %v1218 = vadd.f32 %v1186, 1e-12
    %v1219 = vadd.f32 %v1187, 1e-12
    %v1220 = vrsqrt.pop %v1204
    %v1221 = vrsqrt.pop %v1205
    %v1222 = vrsqrt.pop %v1206
    %v1223 = vrsqrt.pop %v1207
    %v1224 = vrsqrt.pop %v1208
    %v1225 = vrsqrt.pop %v1209
    %v1226 = vrsqrt.pop %v1210
    %v1227 = vrsqrt.pop %v1211
    %v1228 = vrsqrt.pop %v1212
    %v1229 = vrsqrt.pop %v1213
    %v1230 = vrsqrt.pop %v1214
    %v1231 = vrsqrt.pop %v1215
    %v1232 = vrsqrt.pop %v1216
    %v1233 = vrsqrt.pop %v1217
    %v1234 = vrsqrt.pop %v1218
    %v1235 = vrsqrt.pop %v1219
    %v1236 = vmul.f32 %v1188, %v1220
    %v1237 = vmul.f32 %v1189, %v1221
    %v1238 = vmul.f32 %v1190, %v1222
    %v1239 = vmul.f32 %v1191, %v1223
    %v1240 = vmul.f32 %v1192, %v1224
    %v1241 = vmul.f32 %v1193, %v1225
    %v1242 = vmul.f32 %v1194, %v1226
    %v1243 = vmul.f32 %v1195, %v1227
    %v1244 = vmul.f32 %v1196, %v1228
    %v1245 = vmul.f32 %v1197, %v1229
    %v1246 = vmul.f32 %v1198, %v1230
    %v1247 = vmul.f32 %v1199, %v1231
    %v1248 = vmul.f32 %v1200, %v1232
    %v1249 = vmul.f32 %v1201, %v1233
    %v1250 = vmul.f32 %v1202, %v1234
    %v1251 = vmul.f32 %v1203, %v1235
    %v1252 = vlaneseq
    %v1253 = vshrl.u32 %v1252, 7
    %v1254 = vsub.s32 5, %v1253
    %v1255 = vrot.slane %v156, %v1254
    %v1256 = vmul.f32 %v1255, %v1236
    %v1257 = vmul.f32 %v1255, %v1237
    %v1258 = vmul.f32 %v1255, %v1238
    %v1259 = vmul.f32 %v1255, %v1239
    %v1260 = vmul.f32 %v1255, %v1240
    %v1261 = vmul.f32 %v1255, %v1241
    %v1262 = vmul.f32 %v1255, %v1242
    %v1263 = vmul.f32 %v1255, %v1243
    %v1264 = vmul.f32 %v1255, %v1244
    %v1265 = vmul.f32 %v1255, %v1245
    %v1266 = vmul.f32 %v1255, %v1246
    %v1267 = vmul.f32 %v1255, %v1247
    %v1268 = vmul.f32 %v1255, %v1248
    %v1269 = vmul.f32 %v1255, %v1249
    %v1270 = vmul.f32 %v1255, %v1250
    %v1271 = vmul.f32 %v1255, %v1251
    %v1272 = vlaneseq
    %v1273 = vshrl.u32 %v1272, 7
    %v1274 = vsub.s32 6, %v1273
    %v1275 = vrot.slane %v156, %v1274
    %v1276 = vadd.f32 %v1256, %v1275
    %v1277 = vadd.f32 %v1257, %v1275
    %v1278 = vadd.f32 %v1258, %v1275
    %v1279 = vadd.f32 %v1259, %v1275
    %v1280 = vadd.f32 %v1260, %v1275
    %v1281 = vadd.f32 %v1261, %v1275
    %v1282 = vadd.f32 %v1262, %v1275
    %v1283 = vadd.f32 %v1263, %v1275
    %v1284 = vadd.f32 %v1264, %v1275
    %v1285 = vadd.f32 %v1265, %v1275
    %v1286 = vadd.f32 %v1266, %v1275
    %v1287 = vadd.f32 %v1267, %v1275
    %v1288 = vadd.f32 %v1268, %v1275
    %v1289 = vadd.f32 %v1269, %v1275
    %v1290 = vadd.f32 %v1270, %v1275
    %v1291 = vadd.f32 %v1271, %v1275
    %v1292 = vpack.c.bf16 %v1277, %v1276
    %v1293 = vpack.c.bf16 %v1279, %v1278
    %v1294 = vpack.c.bf16 %v1281, %v1280
    %v1295 = vpack.c.bf16 %v1283, %v1282
    %v1296 = vpack.c.bf16 %v1285, %v1284
    %v1297 = vpack.c.bf16 %v1287, %v1286
    %v1298 = vpack.c.bf16 %v1289, %v1288
    %v1299 = vpack.c.bf16 %v1291, %v1290
    %v1300 = vld [vmem:[#allocation13] sm:$0xf]
    %v1301 = vld [vmem:[#allocation13 + $0x4] sm:$0xf]
    %v1302 = vld [vmem:[#allocation13 + $0x8] sm:$0xf]
    %v1303 = vld [vmem:[#allocation13 + $0xc] sm:$0xf]
    %v1304 = vld [vmem:[#allocation13 + $0x10] sm:$0xf]
    %v1305 = vld [vmem:[#allocation13 + $0x14] sm:$0xf]
    %v1306 = vld [vmem:[#allocation13 + $0x18] sm:$0xf]
    %v1307 = vld [vmem:[#allocation13 + $0x1c] sm:$0xf]
    %v1308 = vld [vmem:[#allocation13 + $0x20] sm:$0xf]
    %v1309 = vld [vmem:[#allocation13 + $0x24] sm:$0xf]
    %v1310 = vld [vmem:[#allocation13 + $0x28] sm:$0xf]
    %v1311 = vld [vmem:[#allocation13 + $0x2c] sm:$0xf]
    %v1312 = vld [vmem:[#allocation13 + $0x30] sm:$0xf]
    %v1313 = vld [vmem:[#allocation13 + $0x34] sm:$0xf]
    %v1314 = vld [vmem:[#allocation13 + $0x38] sm:$0xf]
    %v1315 = vld [vmem:[#allocation13 + $0x3c] sm:$0xf]
    %v1316 = vld [vmem:[%s7] sm:$0x1]
    %v1318 = vlaneseq
    %v1319 = vshrl.u32 %v1318, 7
    %v1320 = vsub.s32 0, %v1319
    %v1321 = vrot.slane %v1316, %v1320
    %v1339 = vunpack.c.l.b16 %v1300
    %v1340 = vunpack.c.l.b16 %v1301
    %v1341 = vunpack.c.l.b16 %v1302
    %v1342 = vunpack.c.l.b16 %v1303
    %v1343 = vunpack.c.l.b16 %v1304
    %v1344 = vunpack.c.l.b16 %v1305
    %v1345 = vunpack.c.l.b16 %v1306
    %v1346 = vunpack.c.l.b16 %v1307
    %v1347 = vunpack.c.l.b16 %v1308
    %v1348 = vunpack.c.l.b16 %v1309
    %v1349 = vunpack.c.l.b16 %v1310
    %v1350 = vunpack.c.l.b16 %v1311
    %v1351 = vunpack.c.l.b16 %v1312
    %v1352 = vunpack.c.l.b16 %v1313
    %v1353 = vunpack.c.l.b16 %v1314
    %v1354 = vunpack.c.l.b16 %v1315
    %v1355 = vpack.c.b16 %v1340, %v1339
    %v1356 = vpack.c.b16 %v1342, %v1341
    %v1357 = vpack.c.b16 %v1344, %v1343
    %v1358 = vpack.c.b16 %v1346, %v1345
    %v1359 = vpack.c.b16 %v1348, %v1347
    %v1360 = vpack.c.b16 %v1350, %v1349
    %v1361 = vpack.c.b16 %v1352, %v1351
    %v1362 = vpack.c.b16 %v1354, %v1353
    %1371 = vmatprep.subr.bf16.mxu0 0
    %1372 = vmatpush1.bf16.msra.mxu0 %v1362
    %1373 = vmatprep.subr.bf16.mxu0 0
    %1374 = vmatpush1.bf16.msra.mxu0 %v1361
    %1375 = vmatprep.subr.bf16.mxu0 0
    %1376 = vmatpush1.bf16.msra.mxu0 %v1360
    %1377 = vmatprep.subr.bf16.mxu0 0
    %1378 = vmatpush1.bf16.msra.mxu0 %v1359
    %1379 = vmatprep.subr.bf16.mxu0 0
    %1380 = vmatpush1.bf16.msra.mxu0 %v1358
    %1381 = vmatprep.subr.bf16.mxu0 0
    %1382 = vmatpush1.bf16.msra.mxu0 %v1357
    %1383 = vmatprep.subr.bf16.mxu0 0
    %1384 = vmatpush1.bf16.msra.mxu0 %v1356
    %1385 = vmatprep.subr.bf16.mxu0 0
    %1386 = vmatpush1.bf16.msra.mxu0 %v1355
    %1387 = vmatprep.subr.bf16.mxu0 0
    %1388 = vmatpush2.bf16.msra.mxu0 0
    %1389 = vmatprep.subr.bf16.mxu0 0
    %1390 = vmatpush2.bf16.msra.mxu0 0
    %1391 = vmatprep.subr.bf16.mxu0 0
    %1392 = vmatpush2.bf16.msra.mxu0 0
    %1393 = vmatprep.subr.bf16.mxu0 0
    %1394 = vmatpush2.bf16.msra.mxu0 0
    %1395 = vmatprep.subr.bf16.mxu0 0
    %1396 = vmatpush2.bf16.msra.mxu0 0
    %1397 = vmatprep.subr.bf16.mxu0 0
    %1398 = vmatpush2.bf16.msra.mxu0 0
    %1399 = vmatprep.subr.bf16.mxu0 0
    %1400 = vmatpush2.bf16.msra.mxu0 0
    %1401 = vmatprep.subr.bf16.mxu0 0
    %1402 = vmatpush2.bf16.msra.mxu0 0
    %1403 = vmatprep.mubr.bf16.mxu0 0
    %1404 = vmatmul.mubr.bf16.gmra.mxu0 %v1292
    %v1405 = vpop.f32.mrf.mxu0
    %v1406 = vadd.f32 %v1321, %v1405
    %v1407 = vpop.f32.mrf.mxu0
    %v1408 = vpop.f32.mrf.mxu0
    %v1409 = vadd.f32 %v1321, %v1408
    %v1410 = vpop.f32.mrf.mxu0
    %1411 = vmatprep.mubr.bf16.mxu0 0
    %1412 = vmatmul.mubr.bf16.gmra.mxu0 %v1293
    %v1413 = vpop.f32.mrf.mxu0
    %v1414 = vadd.f32 %v1321, %v1413
    %v1415 = vpop.f32.mrf.mxu0
    %v1416 = vpop.f32.mrf.mxu0
    %v1417 = vadd.f32 %v1321, %v1416
    %v1418 = vpop.f32.mrf.mxu0
    %1419 = vmatprep.mubr.bf16.mxu0 0
    %1420 = vmatmul.mubr.bf16.gmra.mxu0 %v1294
    %v1421 = vpop.f32.mrf.mxu0
    %v1422 = vadd.f32 %v1321, %v1421
    %v1423 = vpop.f32.mrf.mxu0
    %v1424 = vpop.f32.mrf.mxu0
    %v1425 = vadd.f32 %v1321, %v1424
    %v1426 = vpop.f32.mrf.mxu0
    %1427 = vmatprep.mubr.bf16.mxu0 0
    %1428 = vmatmul.mubr.bf16.gmra.mxu0 %v1295
    %v1429 = vpop.f32.mrf.mxu0
    %v1430 = vadd.f32 %v1321, %v1429
    %v1431 = vpop.f32.mrf.mxu0
    %v1432 = vpop.f32.mrf.mxu0
    %v1433 = vadd.f32 %v1321, %v1432
    %v1434 = vpop.f32.mrf.mxu0
    %1435 = vmatprep.mubr.bf16.mxu0 0
    %1436 = vmatmul.mubr.bf16.gmra.mxu0 %v1296
    %v1437 = vpop.f32.mrf.mxu0
    %v1438 = vadd.f32 %v1321, %v1437
    %v1439 = vpop.f32.mrf.mxu0
    %v1440 = vpop.f32.mrf.mxu0
    %v1441 = vadd.f32 %v1321, %v1440
    %v1442 = vpop.f32.mrf.mxu0
    %1443 = vmatprep.mubr.bf16.mxu0 0
    %1444 = vmatmul.mubr.bf16.gmra.mxu0 %v1297
    %v1445 = vpop.f32.mrf.mxu0
    %v1446 = vadd.f32 %v1321, %v1445
    %v1447 = vpop.f32.mrf.mxu0
    %v1448 = vpop.f32.mrf.mxu0
    %v1449 = vadd.f32 %v1321, %v1448
    %v1450 = vpop.f32.mrf.mxu0
    %1451 = vmatprep.mubr.bf16.mxu0 0
    %1452 = vmatmul.mubr.bf16.gmra.mxu0 %v1298
    %v1453 = vpop.f32.mrf.mxu0
    %v1454 = vadd.f32 %v1321, %v1453
    %v1455 = vpop.f32.mrf.mxu0
    %v1456 = vpop.f32.mrf.mxu0
    %v1457 = vadd.f32 %v1321, %v1456
    %v1458 = vpop.f32.mrf.mxu0
    %1459 = vmatprep.mubr.bf16.mxu0 0
    %1460 = vmatmul.mubr.bf16.gmra.mxu0 %v1299
    %v1461 = vpop.f32.mrf.mxu0
    %v1462 = vadd.f32 %v1321, %v1461
    %v1463 = vpop.f32.mrf.mxu0
    %v1464 = vpop.f32.mrf.mxu0
    %v1465 = vadd.f32 %v1321, %v1464
    %v1466 = vpop.f32.mrf.mxu0
    %1467 = vdwg.mxu0
    %1468 = vst [vmem:[#allocation14] sm:$0xff] %v1406
    %1469 = vst [vmem:[#allocation14 + $0x8] sm:$0xff] %v1409
    %1470 = vst [vmem:[#allocation14 + $0x10] sm:$0xff] %v1414
    %1471 = vst [vmem:[#allocation14 + $0x18] sm:$0xff] %v1417
    %1472 = vst [vmem:[#allocation14 + $0x20] sm:$0xff] %v1422
    %1473 = vst [vmem:[#allocation14 + $0x28] sm:$0xff] %v1425
    %1474 = vst [vmem:[#allocation14 + $0x30] sm:$0xff] %v1430
    %1475 = vst [vmem:[#allocation14 + $0x38] sm:$0xff] %v1433
    %1476 = vst [vmem:[#allocation14 + $0x40] sm:$0xff] %v1438
    %1477 = vst [vmem:[#allocation14 + $0x48] sm:$0xff] %v1441
    %1478 = vst [vmem:[#allocation14 + $0x50] sm:$0xff] %v1446
    %1479 = vst [vmem:[#allocation14 + $0x58] sm:$0xff] %v1449
    %1480 = vst [vmem:[#allocation14 + $0x60] sm:$0xff] %v1454
    %1481 = vst [vmem:[#allocation14 + $0x68] sm:$0xff] %v1457
    %1482 = vst [vmem:[#allocation14 + $0x70] sm:$0xff] %v1462
    %1483 = vst [vmem:[#allocation14 + $0x78] sm:$0xff] %v1465
    // Predicated region
    $region62: #{tpu_custom_call.1} parent=1 // pred_check
      _
    $region63: #{tpu_custom_call.1} parent=1 // pred_check_branch
      %1485 = sbr.rel (0) target = $region65
    $region64: #{tpu_custom_call.1} parent=1 // pred_region
      %s1487 = ssub.s32 2048, 2048
      %1488 = vsyncadd [#allocation4], %s1487
      %s1489 = sshll.u32 [#allocation14], 4
      %s1490 = int_to_ptr.vmem [resolvable:$true] %s1489
      %1495 = dma.vmem_to_hbm [thread:$0]  %s1490, 2048, %s8, [#allocation4], 128, 128, 8
    $region65: #{tpu_custom_call.1} parent=1 // pred_fallthru
      _
    // Predicated region
    $region66: #{tpu_custom_call.1} parent=1 // pred_check
      _
    $region67: #{tpu_custom_call.1} parent=1 // pred_check_branch
      %1497 = sbr.rel (0) target = $region69
    $region68: #{tpu_custom_call.1} parent=1 // pred_region
      %1498 = dma.done [#allocation4], 2048
    $region69: #{tpu_custom_call.1} parent=1 // pred_fallthru
      _
    %1499 = vsyncpa [#allocation3], 1
    %1500 = vsyncpa [#allocation6], 1
    %1501 = vsyncpa [#allocation9], 1
    %1502 = vsyncpa [#allocation12], 1
    %1503 = vsyncpa [#allocation4], 1

</llo_original>
